<compile_context>
chip_gen: v7x
topology: tpu7x:2x2x1
jax: 0.10.0
libtpu: 0.0.40
codegen_flags: <defaults>
</compile_context>

<pallas_src>
import math

import numpy as np
import jax
import jax.numpy as jnp
from jax.experimental import pallas as pl
from jax.experimental.pallas import tpu as pltpu


# ----------------------------------------------------------------------------
# Fused Pallas kernel: all LSTM layers + FC in one invocation (no grid).
# ----------------------------------------------------------------------------
def make_lstm_model_kernel(num_layers, seq_len, hidden_size, output_size):
    L, T, H, O = num_layers, seq_len, hidden_size, output_size

    def kernel(*refs):
        # refs = [x,
        #         wih0, whh0, b0,                       (layer 0)
        #         wcat_l, b_l   for l = 1..L-1,         (pre-concat [W_ih ; W_hh])
        #         fc_w, fc_b, out]
        x_ref = refs[0]                        # (B, T, D)  batch-first, no transpose
        idx = 1
        wih0 = refs[idx][...]                  # (D, 4H)
        whh0 = refs[idx + 1][...]              # (H, 4H)
        b0 = refs[idx + 2][...]                # (1, 4H) = b_ih + b_hh
        idx += 3
        wcats, bvecs = [], []
        for _ in range(1, L):
            wcats.append(refs[idx][...])       # (2H, 4H)
            bvecs.append(refs[idx + 1][...])   # (1, 4H)
            idx += 2
        fc_w_ref = refs[idx]                   # (1, H) if O == 1 else (H, O)
        fc_b_ref = refs[idx + 1]               # (1, O)
        out_ref = refs[idx + 2]                # (B, O)

        B = x_ref.shape[0]
        D = x_ref.shape[2]

        # --- Batched, off-critical-path layer-0 input projection:
        #     one (B*T, D) @ (D, 4H) matmul for all timesteps, bias added once.
        x = x_ref[...]                                                 # (B, T, D)
        xproj0 = (jnp.dot(x.reshape(B * T, D), wih0,
                          preferred_element_type=jnp.float32) + b0
                  ).reshape(B, T, 4 * H)                               # (B, T, 4H)

        def cell(gates, c_prev):
            # Full-vreg activations (2 EUP passes, not 4 quarter-tile passes),
            # then slice the already-activated vectors.  PyTorch order [i|f|g|o].
            sig = jax.nn.sigmoid(gates)                                # (B, 4H)
            th = jnp.tanh(gates)                                       # (B, 4H)
            i_g = sig[:, 0 * H:1 * H]
            f_g = sig[:, 1 * H:2 * H]
            g_g = th[:, 2 * H:3 * H]
            o_g = sig[:, 3 * H:4 * H]
            c_new = f_g * c_prev + i_g * g_g
            h_new = o_g * jnp.tanh(c_new)
            return h_new, c_new

        h = [jnp.zeros((B, H), jnp.float32) for _ in range(L)]
        c = [jnp.zeros((B, H), jnp.float32) for _ in range(L)]

        # --- Wavefront schedule over (layer, time): at wave s, layer l runs
        # time t = s - l.  Dependent chain = T + L - 1 hops instead of T * L,
        # and the per-wave matmuls of different layers are independent.
        # Layers are visited high -> low within a wave so h[l-1] still holds the
        # previous wave's value h_{l-1}(t), which is exactly layer l's input.
        for s in range(T + L - 1):
            for l in reversed(range(L)):
                t = s - l
                if 0 <= t < T:
                    if l == 0:
                        gates = xproj0[:, t, :] + jnp.dot(
                            h[0], whh0, preferred_element_type=jnp.float32)
                    else:
                        # Fuse input + recurrent matmuls of layer l into a single
                        # (B, 2H) @ (2H, 4H) MXU push.
                        inp = jnp.concatenate([h[l - 1], h[l]], axis=1)
                        gates = (jnp.dot(inp, wcats[l - 1],
                                         preferred_element_type=jnp.float32)
                                 + bvecs[l - 1])
                    h[l], c[l] = cell(gates, c[l])

        # --- FC head on h_{L-1}(T-1) only (out[:, -1, :]).
        h_last = h[L - 1]                                              # (B, H)
        if O == 1:
            # Lane-dense path: VPU multiply + XLU lane reduction instead of a
            # 1-wide MXU result + masked store.
            out_ref[...] = (jnp.sum(h_last * fc_w_ref[...], axis=-1,
                                    keepdims=True) + fc_b_ref[...])
        else:
            out_ref[...] = (jnp.dot(h_last, fc_w_ref[...],
                                    preferred_element_type=jnp.float32)
                            + fc_b_ref[...])

    return kernel


# ----------------------------------------------------------------------------
# Wrapper (PyTorch-equivalent forward)
# ----------------------------------------------------------------------------
def lstm_model_forward(x_btd, params):
    """Equivalent of LSTMModel.forward (eval mode): x (B, T, input_size) ->
    (B, output_size)."""
    # TODO(synk): nn.LSTM inter-layer dropout is train-mode-only / stochastic;
    # this implements the deterministic eval-mode forward (dropout = identity).
    B, T, D = x_btd.shape
    L = len(params["lstm"])
    H = params["lstm"][0][1].shape[0]
    O = params["fc_w_t"].shape[1]

    args = [x_btd.astype(jnp.float32)]
    # Layer 0: W_ih / W_hh kept separate (x-projection is batched into a slab).
    wih0, whh0, b0 = params["lstm"][0]
    args.extend([wih0, whh0, b0])
    # Layers >= 1: pre-concatenate [W_ih ; W_hh] once in the wrapper.
    for (wih, whh, b) in params["lstm"][1:]:
        args.extend([jnp.concatenate([wih, whh], axis=0), b])
    if O == 1:
        args.append(params["fc_w_t"].reshape(1, H))   # (1, H) row for lane reduce
    else:
        args.append(params["fc_w_t"])                 # (H, O)
    args.append(params["fc_b"])                       # (1, O)

    kernel = make_lstm_model_kernel(L, T, H, O)
    return pl.pallas_call(
        kernel,
        out_shape=jax.ShapeDtypeStruct((B, O), jnp.float32),
        # Everything (x, weights, activations) is tiny and fully VMEM-resident;
        # limit is well inside v7x's 64 MiB physical VMEM.
        compiler_params=pltpu.CompilerParams(vmem_limit_bytes=32 * 1024 * 1024),
    )(*args)


# ----------------------------------------------------------------------------
# Deterministic parameter init (PyTorch-style uniform(-1/sqrt(H), 1/sqrt(H)))
# ----------------------------------------------------------------------------
def init_params(key, input_size, hidden_size, num_layers, output_size):
    k = 1.0 / math.sqrt(hidden_size)
    params = {"lstm": []}
    for layer in range(num_layers):
        in_sz = input_size if layer == 0 else hidden_size
        key, k1, k2, k3, k4 = jax.random.split(key, 5)
        w_ih = jax.random.uniform(k1, (4 * hidden_size, in_sz), jnp.float32, -k, k)
        w_hh = jax.random.uniform(k2, (4 * hidden_size, hidden_size), jnp.float32, -k, k)
        b_ih = jax.random.uniform(k3, (4 * hidden_size,), jnp.float32, -k, k)
        b_hh = jax.random.uniform(k4, (4 * hidden_size,), jnp.float32, -k, k)
        params["lstm"].append((w_ih.T,                         # (in, 4H)
                               w_hh.T,                         # (H, 4H)
                               (b_ih + b_hh)[None, :]))        # (1, 4H)
    key, k5, k6 = jax.random.split(key, 3)
    fc_w = jax.random.uniform(k5, (output_size, hidden_size), jnp.float32, -k, k)
    fc_b = jax.random.uniform(k6, (output_size,), jnp.float32, -k, k)
    params["fc_w_t"] = fc_w.T                                  # (H, O)
    params["fc_b"] = fc_b[None, :]                             # (1, O)
    return params


# ----------------------------------------------------------------------------
# Pure-JAX reference (same math) for a correctness check
# ----------------------------------------------------------------------------
def reference_forward(x_btd, params):
    x = jnp.transpose(x_btd, (1, 0, 2)).astype(jnp.float32)    # (T, B, D)
    for (wih_t, whh_t, b_row) in params["lstm"]:
        H = whh_t.shape[0]
        B = x.shape[1]
        h = jnp.zeros((B, H), jnp.float32)
        c = jnp.zeros((B, H), jnp.float32)

        def step(carry, x_t):
            h, c = carry
            gates = x_t @ wih_t + h @ whh_t + b_row
            i = jax.nn.sigmoid(gates[:, 0 * H:1 * H])
            f = jax.nn.sigmoid(gates[:, 1 * H:2 * H])
            g = jnp.tanh(gates[:, 2 * H:3 * H])
            o = jax.nn.sigmoid(gates[:, 3 * H:4 * H])
            c = f * c + i * g
            h = o * jnp.tanh(c)
            return (h, c), h

        (_, _), hs = jax.lax.scan(step, (h, c), x)
        x = hs
    return x[-1] @ params["fc_w_t"] + params["fc_b"]


# ----------------------------------------------------------------------------
if __name__ == "__main__":
    # Small shapes consistent with the module's forward.
    batch, seq_len = 2, 8
    input_size, hidden_size, num_layers, output_size = 4, 32, 2, 1

    key = jax.random.PRNGKey(0)
    key, xk = jax.random.split(key)
    x = jax.random.normal(xk, (batch, seq_len, input_size), jnp.float32)

    params = init_params(key, input_size, hidden_size, num_layers, output_size)

    out = jax.block_until_ready(lstm_model_forward(x, params))
    assert out.shape == (batch, output_size)

    ref = jax.block_until_ready(reference_forward(x, params))
    if not np.allclose(np.asarray(out), np.asarray(ref), atol=1e-4, rtol=1e-4):
        raise RuntimeError("Pallas LSTM output mismatch vs JAX reference")

    print("KERNEL_OK")
</pallas_src>

<mosaic_0001>
module attributes {stable_mosaic.version = 11 : i64} {
  func.func @kernel(%arg0: memref<2x8x4xf32, #tpu.memory_space<vmem>>, %arg1: memref<4x128xf32, #tpu.memory_space<vmem>>, %arg2: memref<32x128xf32, #tpu.memory_space<vmem>>, %arg3: memref<1x128xf32, #tpu.memory_space<vmem>>, %arg4: memref<64x128xf32, #tpu.memory_space<vmem>>, %arg5: memref<1x128xf32, #tpu.memory_space<vmem>>, %arg6: memref<1x32xf32, #tpu.memory_space<vmem>>, %arg7: memref<1x1xf32, #tpu.memory_space<vmem>>, %arg8: memref<2x1xf32, #tpu.memory_space<vmem>>) attributes {dimension_semantics = [], scalar_prefetch = 0 : i64, scratch_operands = 0 : i64, tpu.core_type = #tpu.core_type<tc>} {
    %c0 = arith.constant 0 : index
    %c0_0 = arith.constant 0 : index
    %0 = vector.load %arg1[%c0, %c0_0] : memref<4x128xf32, #tpu.memory_space<vmem>>, vector<4x128xf32>
    %c0_1 = arith.constant 0 : index
    %c0_2 = arith.constant 0 : index
    %1 = vector.load %arg2[%c0_1, %c0_2] : memref<32x128xf32, #tpu.memory_space<vmem>>, vector<32x128xf32>
    %c0_3 = arith.constant 0 : index
    %c0_4 = arith.constant 0 : index
    %2 = vector.load %arg3[%c0_3, %c0_4] : memref<1x128xf32, #tpu.memory_space<vmem>>, vector<1x128xf32>
    %c0_5 = arith.constant 0 : index
    %c0_6 = arith.constant 0 : index
    %3 = vector.load %arg4[%c0_5, %c0_6] : memref<64x128xf32, #tpu.memory_space<vmem>>, vector<64x128xf32>
    %c0_7 = arith.constant 0 : index
    %c0_8 = arith.constant 0 : index
    %4 = vector.load %arg5[%c0_7, %c0_8] : memref<1x128xf32, #tpu.memory_space<vmem>>, vector<1x128xf32>
    %c0_9 = arith.constant 0 : index
    %c0_10 = arith.constant 0 : index
    %c0_11 = arith.constant 0 : index
    %5 = vector.load %arg0[%c0_9, %c0_10, %c0_11] : memref<2x8x4xf32, #tpu.memory_space<vmem>>, vector<2x8x4xf32>
    %6 = vector.shape_cast %5 : vector<2x8x4xf32> to vector<16x4xf32>
    %cst = arith.constant dense<0.000000e+00> : vector<16x128xf32>
    %7 = tpu.matmul %6, %0, %cst {dimension_numbers = #tpu.dot_dimension_numbers<[1], [0], [0], [1], [0, 0, 1, 1], [], []>} : vector<16x4xf32>, vector<4x128xf32>, vector<16x128xf32> -> vector<16x128xf32>
    %8 = vector.broadcast %2 : vector<1x128xf32> to vector<16x128xf32>
    %9 = arith.addf %7, %8 : vector<16x128xf32>
    %10 = vector.shape_cast %9 : vector<16x128xf32> to vector<2x8x128xf32>
    %cst_12 = arith.constant 0.000000e+00 : f32
    %11 = vector.broadcast %cst_12 : f32 to vector<2x32xf32>
    %cst_13 = arith.constant 0.000000e+00 : f32
    %12 = vector.broadcast %cst_13 : f32 to vector<2x32xf32>
    %cst_14 = arith.constant 0.000000e+00 : f32
    %13 = vector.broadcast %cst_14 : f32 to vector<2x32xf32>
    %cst_15 = arith.constant 0.000000e+00 : f32
    %14 = vector.broadcast %cst_15 : f32 to vector<2x32xf32>
    %15 = vector.extract_strided_slice %10 {offsets = [0, 0, 0], sizes = [2, 1, 128], strides = [1, 1, 1]} : vector<2x8x128xf32> to vector<2x1x128xf32>
    %16 = vector.shape_cast %15 : vector<2x1x128xf32> to vector<2x128xf32>
    %cst_16 = arith.constant dense<0.000000e+00> : vector<2x128xf32>
    %17 = tpu.matmul %11, %1, %cst_16 {dimension_numbers = #tpu.dot_dimension_numbers<[1], [0], [0], [1], [0, 0, 1, 1], [], []>} : vector<2x32xf32>, vector<32x128xf32>, vector<2x128xf32> -> vector<2x128xf32>
    %18 = arith.addf %16, %17 : vector<2x128xf32>
    %19 = arith.negf %18 : vector<2x128xf32>
    %20 = math.exp %19 : vector<2x128xf32>
    %cst_17 = arith.constant 1.000000e+00 : f32
    %21 = vector.broadcast %cst_17 : f32 to vector<2x128xf32>
    %22 = arith.addf %21, %20 : vector<2x128xf32>
    %23 = arith.divf %21, %22 : vector<2x128xf32>
    %24 = math.tanh %18 : vector<2x128xf32>
    %25 = vector.extract_strided_slice %23 {offsets = [0, 0], sizes = [2, 32], strides = [1, 1]} : vector<2x128xf32> to vector<2x32xf32>
    %26 = vector.extract_strided_slice %23 {offsets = [0, 32], sizes = [2, 32], strides = [1, 1]} : vector<2x128xf32> to vector<2x32xf32>
    %27 = vector.extract_strided_slice %24 {offsets = [0, 64], sizes = [2, 32], strides = [1, 1]} : vector<2x128xf32> to vector<2x32xf32>
    %28 = vector.extract_strided_slice %23 {offsets = [0, 96], sizes = [2, 32], strides = [1, 1]} : vector<2x128xf32> to vector<2x32xf32>
    %29 = arith.mulf %26, %13 : vector<2x32xf32>
    %30 = arith.mulf %25, %27 : vector<2x32xf32>
    %31 = arith.addf %29, %30 : vector<2x32xf32>
    %32 = math.tanh %31 : vector<2x32xf32>
    %33 = arith.mulf %28, %32 : vector<2x32xf32>
    %34 = tpu.concatenate %33, %12 in 1 : vector<2x32xf32>, vector<2x32xf32> -> vector<2x64xf32>
    %cst_18 = arith.constant dense<0.000000e+00> : vector<2x128xf32>
    %35 = tpu.matmul %34, %3, %cst_18 {dimension_numbers = #tpu.dot_dimension_numbers<[1], [0], [0], [1], [0, 0, 1, 1], [], []>} : vector<2x64xf32>, vector<64x128xf32>, vector<2x128xf32> -> vector<2x128xf32>
    %36 = vector.broadcast %4 : vector<1x128xf32> to vector<2x128xf32>
    %37 = arith.addf %35, %36 : vector<2x128xf32>
    %38 = arith.negf %37 : vector<2x128xf32>
    %39 = math.exp %38 : vector<2x128xf32>
    %cst_19 = arith.constant 1.000000e+00 : f32
    %40 = vector.broadcast %cst_19 : f32 to vector<2x128xf32>
    %41 = arith.addf %40, %39 : vector<2x128xf32>
    %42 = arith.divf %40, %41 : vector<2x128xf32>
    %43 = math.tanh %37 : vector<2x128xf32>
    %44 = vector.extract_strided_slice %42 {offsets = [0, 0], sizes = [2, 32], strides = [1, 1]} : vector<2x128xf32> to vector<2x32xf32>
    %45 = vector.extract_strided_slice %42 {offsets = [0, 32], sizes = [2, 32], strides = [1, 1]} : vector<2x128xf32> to vector<2x32xf32>
    %46 = vector.extract_strided_slice %43 {offsets = [0, 64], sizes = [2, 32], strides = [1, 1]} : vector<2x128xf32> to vector<2x32xf32>
    %47 = vector.extract_strided_slice %42 {offsets = [0, 96], sizes = [2, 32], strides = [1, 1]} : vector<2x128xf32> to vector<2x32xf32>
    %48 = arith.mulf %45, %14 : vector<2x32xf32>
    %49 = arith.mulf %44, %46 : vector<2x32xf32>
    %50 = arith.addf %48, %49 : vector<2x32xf32>
    %51 = math.tanh %50 : vector<2x32xf32>
    %52 = arith.mulf %47, %51 : vector<2x32xf32>
    %53 = vector.extract_strided_slice %10 {offsets = [0, 1, 0], sizes = [2, 1, 128], strides = [1, 1, 1]} : vector<2x8x128xf32> to vector<2x1x128xf32>
    %54 = vector.shape_cast %53 : vector<2x1x128xf32> to vector<2x128xf32>
    %cst_20 = arith.constant dense<0.000000e+00> : vector<2x128xf32>
    %55 = tpu.matmul %33, %1, %cst_20 {dimension_numbers = #tpu.dot_dimension_numbers<[1], [0], [0], [1], [0, 0, 1, 1], [], []>} : vector<2x32xf32>, vector<32x128xf32>, vector<2x128xf32> -> vector<2x128xf32>
    %56 = arith.addf %54, %55 : vector<2x128xf32>
    %57 = arith.negf %56 : vector<2x128xf32>
    %58 = math.exp %57 : vector<2x128xf32>
    %cst_21 = arith.constant 1.000000e+00 : f32
    %59 = vector.broadcast %cst_21 : f32 to vector<2x128xf32>
    %60 = arith.addf %59, %58 : vector<2x128xf32>
    %61 = arith.divf %59, %60 : vector<2x128xf32>
    %62 = math.tanh %56 : vector<2x128xf32>
    %63 = vector.extract_strided_slice %61 {offsets = [0, 0], sizes = [2, 32], strides = [1, 1]} : vector<2x128xf32> to vector<2x32xf32>
    %64 = vector.extract_strided_slice %61 {offsets = [0, 32], sizes = [2, 32], strides = [1, 1]} : vector<2x128xf32> to vector<2x32xf32>
    %65 = vector.extract_strided_slice %62 {offsets = [0, 64], sizes = [2, 32], strides = [1, 1]} : vector<2x128xf32> to vector<2x32xf32>
    %66 = vector.extract_strided_slice %61 {offsets = [0, 96], sizes = [2, 32], strides = [1, 1]} : vector<2x128xf32> to vector<2x32xf32>
    %67 = arith.mulf %64, %31 : vector<2x32xf32>
    %68 = arith.mulf %63, %65 : vector<2x32xf32>
    %69 = arith.addf %67, %68 : vector<2x32xf32>
    %70 = math.tanh %69 : vector<2x32xf32>
    %71 = arith.mulf %66, %70 : vector<2x32xf32>
    %72 = tpu.concatenate %71, %52 in 1 : vector<2x32xf32>, vector<2x32xf32> -> vector<2x64xf32>
    %cst_22 = arith.constant dense<0.000000e+00> : vector<2x128xf32>
    %73 = tpu.matmul %72, %3, %cst_22 {dimension_numbers = #tpu.dot_dimension_numbers<[1], [0], [0], [1], [0, 0, 1, 1], [], []>} : vector<2x64xf32>, vector<64x128xf32>, vector<2x128xf32> -> vector<2x128xf32>
    %74 = vector.broadcast %4 : vector<1x128xf32> to vector<2x128xf32>
    %75 = arith.addf %73, %74 : vector<2x128xf32>
    %76 = arith.negf %75 : vector<2x128xf32>
    %77 = math.exp %76 : vector<2x128xf32>
    %cst_23 = arith.constant 1.000000e+00 : f32
    %78 = vector.broadcast %cst_23 : f32 to vector<2x128xf32>
    %79 = arith.addf %78, %77 : vector<2x128xf32>
    %80 = arith.divf %78, %79 : vector<2x128xf32>
    %81 = math.tanh %75 : vector<2x128xf32>
    %82 = vector.extract_strided_slice %80 {offsets = [0, 0], sizes = [2, 32], strides = [1, 1]} : vector<2x128xf32> to vector<2x32xf32>
    %83 = vector.extract_strided_slice %80 {offsets = [0, 32], sizes = [2, 32], strides = [1, 1]} : vector<2x128xf32> to vector<2x32xf32>
    %84 = vector.extract_strided_slice %81 {offsets = [0, 64], sizes = [2, 32], strides = [1, 1]} : vector<2x128xf32> to vector<2x32xf32>
    %85 = vector.extract_strided_slice %80 {offsets = [0, 96], sizes = [2, 32], strides = [1, 1]} : vector<2x128xf32> to vector<2x32xf32>
    %86 = arith.mulf %83, %50 : vector<2x32xf32>
    %87 = arith.mulf %82, %84 : vector<2x32xf32>
    %88 = arith.addf %86, %87 : vector<2x32xf32>
    %89 = math.tanh %88 : vector<2x32xf32>
    %90 = arith.mulf %85, %89 : vector<2x32xf32>
    %91 = vector.extract_strided_slice %10 {offsets = [0, 2, 0], sizes = [2, 1, 128], strides = [1, 1, 1]} : vector<2x8x128xf32> to vector<2x1x128xf32>
    %92 = vector.shape_cast %91 : vector<2x1x128xf32> to vector<2x128xf32>
    %cst_24 = arith.constant dense<0.000000e+00> : vector<2x128xf32>
    %93 = tpu.matmul %71, %1, %cst_24 {dimension_numbers = #tpu.dot_dimension_numbers<[1], [0], [0], [1], [0, 0, 1, 1], [], []>} : vector<2x32xf32>, vector<32x128xf32>, vector<2x128xf32> -> vector<2x128xf32>
    %94 = arith.addf %92, %93 : vector<2x128xf32>
    %95 = arith.negf %94 : vector<2x128xf32>
    %96 = math.exp %95 : vector<2x128xf32>
    %cst_25 = arith.constant 1.000000e+00 : f32
    %97 = vector.broadcast %cst_25 : f32 to vector<2x128xf32>
    %98 = arith.addf %97, %96 : vector<2x128xf32>
    %99 = arith.divf %97, %98 : vector<2x128xf32>
    %100 = math.tanh %94 : vector<2x128xf32>
    %101 = vector.extract_strided_slice %99 {offsets = [0, 0], sizes = [2, 32], strides = [1, 1]} : vector<2x128xf32> to vector<2x32xf32>
    %102 = vector.extract_strided_slice %99 {offsets = [0, 32], sizes = [2, 32], strides = [1, 1]} : vector<2x128xf32> to vector<2x32xf32>
    %103 = vector.extract_strided_slice %100 {offsets = [0, 64], sizes = [2, 32], strides = [1, 1]} : vector<2x128xf32> to vector<2x32xf32>
    %104 = vector.extract_strided_slice %99 {offsets = [0, 96], sizes = [2, 32], strides = [1, 1]} : vector<2x128xf32> to vector<2x32xf32>
    %105 = arith.mulf %102, %69 : vector<2x32xf32>
    %106 = arith.mulf %101, %103 : vector<2x32xf32>
    %107 = arith.addf %105, %106 : vector<2x32xf32>
    %108 = math.tanh %107 : vector<2x32xf32>
    %109 = arith.mulf %104, %108 : vector<2x32xf32>
    %110 = tpu.concatenate %109, %90 in 1 : vector<2x32xf32>, vector<2x32xf32> -> vector<2x64xf32>
    %cst_26 = arith.constant dense<0.000000e+00> : vector<2x128xf32>
    %111 = tpu.matmul %110, %3, %cst_26 {dimension_numbers = #tpu.dot_dimension_numbers<[1], [0], [0], [1], [0, 0, 1, 1], [], []>} : vector<2x64xf32>, vector<64x128xf32>, vector<2x128xf32> -> vector<2x128xf32>
    %112 = vector.broadcast %4 : vector<1x128xf32> to vector<2x128xf32>
    %113 = arith.addf %111, %112 : vector<2x128xf32>
    %114 = arith.negf %113 : vector<2x128xf32>
    %115 = math.exp %114 : vector<2x128xf32>
    %cst_27 = arith.constant 1.000000e+00 : f32
    %116 = vector.broadcast %cst_27 : f32 to vector<2x128xf32>
    %117 = arith.addf %116, %115 : vector<2x128xf32>
    %118 = arith.divf %116, %117 : vector<2x128xf32>
    %119 = math.tanh %113 : vector<2x128xf32>
    %120 = vector.extract_strided_slice %118 {offsets = [0, 0], sizes = [2, 32], strides = [1, 1]} : vector<2x128xf32> to vector<2x32xf32>
    %121 = vector.extract_strided_slice %118 {offsets = [0, 32], sizes = [2, 32], strides = [1, 1]} : vector<2x128xf32> to vector<2x32xf32>
    %122 = vector.extract_strided_slice %119 {offsets = [0, 64], sizes = [2, 32], strides = [1, 1]} : vector<2x128xf32> to vector<2x32xf32>
    %123 = vector.extract_strided_slice %118 {offsets = [0, 96], sizes = [2, 32], strides = [1, 1]} : vector<2x128xf32> to vector<2x32xf32>
    %124 = arith.mulf %121, %88 : vector<2x32xf32>
    %125 = arith.mulf %120, %122 : vector<2x32xf32>
    %126 = arith.addf %124, %125 : vector<2x32xf32>
    %127 = math.tanh %126 : vector<2x32xf32>
    %128 = arith.mulf %123, %127 : vector<2x32xf32>
    %129 = vector.extract_strided_slice %10 {offsets = [0, 3, 0], sizes = [2, 1, 128], strides = [1, 1, 1]} : vector<2x8x128xf32> to vector<2x1x128xf32>
    %130 = vector.shape_cast %129 : vector<2x1x128xf32> to vector<2x128xf32>
    %cst_28 = arith.constant dense<0.000000e+00> : vector<2x128xf32>
    %131 = tpu.matmul %109, %1, %cst_28 {dimension_numbers = #tpu.dot_dimension_numbers<[1], [0], [0], [1], [0, 0, 1, 1], [], []>} : vector<2x32xf32>, vector<32x128xf32>, vector<2x128xf32> -> vector<2x128xf32>
    %132 = arith.addf %130, %131 : vector<2x128xf32>
    %133 = arith.negf %132 : vector<2x128xf32>
    %134 = math.exp %133 : vector<2x128xf32>
    %cst_29 = arith.constant 1.000000e+00 : f32
    %135 = vector.broadcast %cst_29 : f32 to vector<2x128xf32>
    %136 = arith.addf %135, %134 : vector<2x128xf32>
    %137 = arith.divf %135, %136 : vector<2x128xf32>
    %138 = math.tanh %132 : vector<2x128xf32>
    %139 = vector.extract_strided_slice %137 {offsets = [0, 0], sizes = [2, 32], strides = [1, 1]} : vector<2x128xf32> to vector<2x32xf32>
    %140 = vector.extract_strided_slice %137 {offsets = [0, 32], sizes = [2, 32], strides = [1, 1]} : vector<2x128xf32> to vector<2x32xf32>
    %141 = vector.extract_strided_slice %138 {offsets = [0, 64], sizes = [2, 32], strides = [1, 1]} : vector<2x128xf32> to vector<2x32xf32>
    %142 = vector.extract_strided_slice %137 {offsets = [0, 96], sizes = [2, 32], strides = [1, 1]} : vector<2x128xf32> to vector<2x32xf32>
    %143 = arith.mulf %140, %107 : vector<2x32xf32>
    %144 = arith.mulf %139, %141 : vector<2x32xf32>
    %145 = arith.addf %143, %144 : vector<2x32xf32>
    %146 = math.tanh %145 : vector<2x32xf32>
    %147 = arith.mulf %142, %146 : vector<2x32xf32>
    %148 = tpu.concatenate %147, %128 in 1 : vector<2x32xf32>, vector<2x32xf32> -> vector<2x64xf32>
    %cst_30 = arith.constant dense<0.000000e+00> : vector<2x128xf32>
    %149 = tpu.matmul %148, %3, %cst_30 {dimension_numbers = #tpu.dot_dimension_numbers<[1], [0], [0], [1], [0, 0, 1, 1], [], []>} : vector<2x64xf32>, vector<64x128xf32>, vector<2x128xf32> -> vector<2x128xf32>
    %150 = vector.broadcast %4 : vector<1x128xf32> to vector<2x128xf32>
    %151 = arith.addf %149, %150 : vector<2x128xf32>
    %152 = arith.negf %151 : vector<2x128xf32>
    %153 = math.exp %152 : vector<2x128xf32>
    %cst_31 = arith.constant 1.000000e+00 : f32
    %154 = vector.broadcast %cst_31 : f32 to vector<2x128xf32>
    %155 = arith.addf %154, %153 : vector<2x128xf32>
    %156 = arith.divf %154, %155 : vector<2x128xf32>
    %157 = math.tanh %151 : vector<2x128xf32>
    %158 = vector.extract_strided_slice %156 {offsets = [0, 0], sizes = [2, 32], strides = [1, 1]} : vector<2x128xf32> to vector<2x32xf32>
    %159 = vector.extract_strided_slice %156 {offsets = [0, 32], sizes = [2, 32], strides = [1, 1]} : vector<2x128xf32> to vector<2x32xf32>
    %160 = vector.extract_strided_slice %157 {offsets = [0, 64], sizes = [2, 32], strides = [1, 1]} : vector<2x128xf32> to vector<2x32xf32>
    %161 = vector.extract_strided_slice %156 {offsets = [0, 96], sizes = [2, 32], strides = [1, 1]} : vector<2x128xf32> to vector<2x32xf32>
    %162 = arith.mulf %159, %126 : vector<2x32xf32>
    %163 = arith.mulf %158, %160 : vector<2x32xf32>
    %164 = arith.addf %162, %163 : vector<2x32xf32>
    %165 = math.tanh %164 : vector<2x32xf32>
    %166 = arith.mulf %161, %165 : vector<2x32xf32>
    %167 = vector.extract_strided_slice %10 {offsets = [0, 4, 0], sizes = [2, 1, 128], strides = [1, 1, 1]} : vector<2x8x128xf32> to vector<2x1x128xf32>
    %168 = vector.shape_cast %167 : vector<2x1x128xf32> to vector<2x128xf32>
    %cst_32 = arith.constant dense<0.000000e+00> : vector<2x128xf32>
    %169 = tpu.matmul %147, %1, %cst_32 {dimension_numbers = #tpu.dot_dimension_numbers<[1], [0], [0], [1], [0, 0, 1, 1], [], []>} : vector<2x32xf32>, vector<32x128xf32>, vector<2x128xf32> -> vector<2x128xf32>
    %170 = arith.addf %168, %169 : vector<2x128xf32>
    %171 = arith.negf %170 : vector<2x128xf32>
    %172 = math.exp %171 : vector<2x128xf32>
    %cst_33 = arith.constant 1.000000e+00 : f32
    %173 = vector.broadcast %cst_33 : f32 to vector<2x128xf32>
    %174 = arith.addf %173, %172 : vector<2x128xf32>
    %175 = arith.divf %173, %174 : vector<2x128xf32>
    %176 = math.tanh %170 : vector<2x128xf32>
    %177 = vector.extract_strided_slice %175 {offsets = [0, 0], sizes = [2, 32], strides = [1, 1]} : vector<2x128xf32> to vector<2x32xf32>
    %178 = vector.extract_strided_slice %175 {offsets = [0, 32], sizes = [2, 32], strides = [1, 1]} : vector<2x128xf32> to vector<2x32xf32>
    %179 = vector.extract_strided_slice %176 {offsets = [0, 64], sizes = [2, 32], strides = [1, 1]} : vector<2x128xf32> to vector<2x32xf32>
    %180 = vector.extract_strided_slice %175 {offsets = [0, 96], sizes = [2, 32], strides = [1, 1]} : vector<2x128xf32> to vector<2x32xf32>
    %181 = arith.mulf %178, %145 : vector<2x32xf32>
    %182 = arith.mulf %177, %179 : vector<2x32xf32>
    %183 = arith.addf %181, %182 : vector<2x32xf32>
    %184 = math.tanh %183 : vector<2x32xf32>
    %185 = arith.mulf %180, %184 : vector<2x32xf32>
    %186 = tpu.concatenate %185, %166 in 1 : vector<2x32xf32>, vector<2x32xf32> -> vector<2x64xf32>
    %cst_34 = arith.constant dense<0.000000e+00> : vector<2x128xf32>
    %187 = tpu.matmul %186, %3, %cst_34 {dimension_numbers = #tpu.dot_dimension_numbers<[1], [0], [0], [1], [0, 0, 1, 1], [], []>} : vector<2x64xf32>, vector<64x128xf32>, vector<2x128xf32> -> vector<2x128xf32>
    %188 = vector.broadcast %4 : vector<1x128xf32> to vector<2x128xf32>
    %189 = arith.addf %187, %188 : vector<2x128xf32>
    %190 = arith.negf %189 : vector<2x128xf32>
    %191 = math.exp %190 : vector<2x128xf32>
    %cst_35 = arith.constant 1.000000e+00 : f32
    %192 = vector.broadcast %cst_35 : f32 to vector<2x128xf32>
    %193 = arith.addf %192, %191 : vector<2x128xf32>
    %194 = arith.divf %192, %193 : vector<2x128xf32>
    %195 = math.tanh %189 : vector<2x128xf32>
    %196 = vector.extract_strided_slice %194 {offsets = [0, 0], sizes = [2, 32], strides = [1, 1]} : vector<2x128xf32> to vector<2x32xf32>
    %197 = vector.extract_strided_slice %194 {offsets = [0, 32], sizes = [2, 32], strides = [1, 1]} : vector<2x128xf32> to vector<2x32xf32>
    %198 = vector.extract_strided_slice %195 {offsets = [0, 64], sizes = [2, 32], strides = [1, 1]} : vector<2x128xf32> to vector<2x32xf32>
    %199 = vector.extract_strided_slice %194 {offsets = [0, 96], sizes = [2, 32], strides = [1, 1]} : vector<2x128xf32> to vector<2x32xf32>
    %200 = arith.mulf %197, %164 : vector<2x32xf32>
    %201 = arith.mulf %196, %198 : vector<2x32xf32>
    %202 = arith.addf %200, %201 : vector<2x32xf32>
    %203 = math.tanh %202 : vector<2x32xf32>
    %204 = arith.mulf %199, %203 : vector<2x32xf32>
    %205 = vector.extract_strided_slice %10 {offsets = [0, 5, 0], sizes = [2, 1, 128], strides = [1, 1, 1]} : vector<2x8x128xf32> to vector<2x1x128xf32>
    %206 = vector.shape_cast %205 : vector<2x1x128xf32> to vector<2x128xf32>
    %cst_36 = arith.constant dense<0.000000e+00> : vector<2x128xf32>
    %207 = tpu.matmul %185, %1, %cst_36 {dimension_numbers = #tpu.dot_dimension_numbers<[1], [0], [0], [1], [0, 0, 1, 1], [], []>} : vector<2x32xf32>, vector<32x128xf32>, vector<2x128xf32> -> vector<2x128xf32>
    %208 = arith.addf %206, %207 : vector<2x128xf32>
    %209 = arith.negf %208 : vector<2x128xf32>
    %210 = math.exp %209 : vector<2x128xf32>
    %cst_37 = arith.constant 1.000000e+00 : f32
    %211 = vector.broadcast %cst_37 : f32 to vector<2x128xf32>
    %212 = arith.addf %211, %210 : vector<2x128xf32>
    %213 = arith.divf %211, %212 : vector<2x128xf32>
    %214 = math.tanh %208 : vector<2x128xf32>
    %215 = vector.extract_strided_slice %213 {offsets = [0, 0], sizes = [2, 32], strides = [1, 1]} : vector<2x128xf32> to vector<2x32xf32>
    %216 = vector.extract_strided_slice %213 {offsets = [0, 32], sizes = [2, 32], strides = [1, 1]} : vector<2x128xf32> to vector<2x32xf32>
    %217 = vector.extract_strided_slice %214 {offsets = [0, 64], sizes = [2, 32], strides = [1, 1]} : vector<2x128xf32> to vector<2x32xf32>
    %218 = vector.extract_strided_slice %213 {offsets = [0, 96], sizes = [2, 32], strides = [1, 1]} : vector<2x128xf32> to vector<2x32xf32>
    %219 = arith.mulf %216, %183 : vector<2x32xf32>
    %220 = arith.mulf %215, %217 : vector<2x32xf32>
    %221 = arith.addf %219, %220 : vector<2x32xf32>
    %222 = math.tanh %221 : vector<2x32xf32>
    %223 = arith.mulf %218, %222 : vector<2x32xf32>
    %224 = tpu.concatenate %223, %204 in 1 : vector<2x32xf32>, vector<2x32xf32> -> vector<2x64xf32>
    %cst_38 = arith.constant dense<0.000000e+00> : vector<2x128xf32>
    %225 = tpu.matmul %224, %3, %cst_38 {dimension_numbers = #tpu.dot_dimension_numbers<[1], [0], [0], [1], [0, 0, 1, 1], [], []>} : vector<2x64xf32>, vector<64x128xf32>, vector<2x128xf32> -> vector<2x128xf32>
    %226 = vector.broadcast %4 : vector<1x128xf32> to vector<2x128xf32>
    %227 = arith.addf %225, %226 : vector<2x128xf32>
    %228 = arith.negf %227 : vector<2x128xf32>
    %229 = math.exp %228 : vector<2x128xf32>
    %cst_39 = arith.constant 1.000000e+00 : f32
    %230 = vector.broadcast %cst_39 : f32 to vector<2x128xf32>
    %231 = arith.addf %230, %229 : vector<2x128xf32>
    %232 = arith.divf %230, %231 : vector<2x128xf32>
    %233 = math.tanh %227 : vector<2x128xf32>
    %234 = vector.extract_strided_slice %232 {offsets = [0, 0], sizes = [2, 32], strides = [1, 1]} : vector<2x128xf32> to vector<2x32xf32>
    %235 = vector.extract_strided_slice %232 {offsets = [0, 32], sizes = [2, 32], strides = [1, 1]} : vector<2x128xf32> to vector<2x32xf32>
    %236 = vector.extract_strided_slice %233 {offsets = [0, 64], sizes = [2, 32], strides = [1, 1]} : vector<2x128xf32> to vector<2x32xf32>
    %237 = vector.extract_strided_slice %232 {offsets = [0, 96], sizes = [2, 32], strides = [1, 1]} : vector<2x128xf32> to vector<2x32xf32>
    %238 = arith.mulf %235, %202 : vector<2x32xf32>
    %239 = arith.mulf %234, %236 : vector<2x32xf32>
    %240 = arith.addf %238, %239 : vector<2x32xf32>
    %241 = math.tanh %240 : vector<2x32xf32>
    %242 = arith.mulf %237, %241 : vector<2x32xf32>
    %243 = vector.extract_strided_slice %10 {offsets = [0, 6, 0], sizes = [2, 1, 128], strides = [1, 1, 1]} : vector<2x8x128xf32> to vector<2x1x128xf32>
    %244 = vector.shape_cast %243 : vector<2x1x128xf32> to vector<2x128xf32>
    %cst_40 = arith.constant dense<0.000000e+00> : vector<2x128xf32>
    %245 = tpu.matmul %223, %1, %cst_40 {dimension_numbers = #tpu.dot_dimension_numbers<[1], [0], [0], [1], [0, 0, 1, 1], [], []>} : vector<2x32xf32>, vector<32x128xf32>, vector<2x128xf32> -> vector<2x128xf32>
    %246 = arith.addf %244, %245 : vector<2x128xf32>
    %247 = arith.negf %246 : vector<2x128xf32>
    %248 = math.exp %247 : vector<2x128xf32>
    %cst_41 = arith.constant 1.000000e+00 : f32
    %249 = vector.broadcast %cst_41 : f32 to vector<2x128xf32>
    %250 = arith.addf %249, %248 : vector<2x128xf32>
    %251 = arith.divf %249, %250 : vector<2x128xf32>
    %252 = math.tanh %246 : vector<2x128xf32>
    %253 = vector.extract_strided_slice %251 {offsets = [0, 0], sizes = [2, 32], strides = [1, 1]} : vector<2x128xf32> to vector<2x32xf32>
    %254 = vector.extract_strided_slice %251 {offsets = [0, 32], sizes = [2, 32], strides = [1, 1]} : vector<2x128xf32> to vector<2x32xf32>
    %255 = vector.extract_strided_slice %252 {offsets = [0, 64], sizes = [2, 32], strides = [1, 1]} : vector<2x128xf32> to vector<2x32xf32>
    %256 = vector.extract_strided_slice %251 {offsets = [0, 96], sizes = [2, 32], strides = [1, 1]} : vector<2x128xf32> to vector<2x32xf32>
    %257 = arith.mulf %254, %221 : vector<2x32xf32>
    %258 = arith.mulf %253, %255 : vector<2x32xf32>
    %259 = arith.addf %257, %258 : vector<2x32xf32>
    %260 = math.tanh %259 : vector<2x32xf32>
    %261 = arith.mulf %256, %260 : vector<2x32xf32>
    %262 = tpu.concatenate %261, %242 in 1 : vector<2x32xf32>, vector<2x32xf32> -> vector<2x64xf32>
    %cst_42 = arith.constant dense<0.000000e+00> : vector<2x128xf32>
    %263 = tpu.matmul %262, %3, %cst_42 {dimension_numbers = #tpu.dot_dimension_numbers<[1], [0], [0], [1], [0, 0, 1, 1], [], []>} : vector<2x64xf32>, vector<64x128xf32>, vector<2x128xf32> -> vector<2x128xf32>
    %264 = vector.broadcast %4 : vector<1x128xf32> to vector<2x128xf32>
    %265 = arith.addf %263, %264 : vector<2x128xf32>
    %266 = arith.negf %265 : vector<2x128xf32>
    %267 = math.exp %266 : vector<2x128xf32>
    %cst_43 = arith.constant 1.000000e+00 : f32
    %268 = vector.broadcast %cst_43 : f32 to vector<2x128xf32>
    %269 = arith.addf %268, %267 : vector<2x128xf32>
    %270 = arith.divf %268, %269 : vector<2x128xf32>
    %271 = math.tanh %265 : vector<2x128xf32>
    %272 = vector.extract_strided_slice %270 {offsets = [0, 0], sizes = [2, 32], strides = [1, 1]} : vector<2x128xf32> to vector<2x32xf32>
    %273 = vector.extract_strided_slice %270 {offsets = [0, 32], sizes = [2, 32], strides = [1, 1]} : vector<2x128xf32> to vector<2x32xf32>
    %274 = vector.extract_strided_slice %271 {offsets = [0, 64], sizes = [2, 32], strides = [1, 1]} : vector<2x128xf32> to vector<2x32xf32>
    %275 = vector.extract_strided_slice %270 {offsets = [0, 96], sizes = [2, 32], strides = [1, 1]} : vector<2x128xf32> to vector<2x32xf32>
    %276 = arith.mulf %273, %240 : vector<2x32xf32>
    %277 = arith.mulf %272, %274 : vector<2x32xf32>
    %278 = arith.addf %276, %277 : vector<2x32xf32>
    %279 = math.tanh %278 : vector<2x32xf32>
    %280 = arith.mulf %275, %279 : vector<2x32xf32>
    %281 = vector.extract_strided_slice %10 {offsets = [0, 7, 0], sizes = [2, 1, 128], strides = [1, 1, 1]} : vector<2x8x128xf32> to vector<2x1x128xf32>
    %282 = vector.shape_cast %281 : vector<2x1x128xf32> to vector<2x128xf32>
    %cst_44 = arith.constant dense<0.000000e+00> : vector<2x128xf32>
    %283 = tpu.matmul %261, %1, %cst_44 {dimension_numbers = #tpu.dot_dimension_numbers<[1], [0], [0], [1], [0, 0, 1, 1], [], []>} : vector<2x32xf32>, vector<32x128xf32>, vector<2x128xf32> -> vector<2x128xf32>
    %284 = arith.addf %282, %283 : vector<2x128xf32>
    %285 = arith.negf %284 : vector<2x128xf32>
    %286 = math.exp %285 : vector<2x128xf32>
    %cst_45 = arith.constant 1.000000e+00 : f32
    %287 = vector.broadcast %cst_45 : f32 to vector<2x128xf32>
    %288 = arith.addf %287, %286 : vector<2x128xf32>
    %289 = arith.divf %287, %288 : vector<2x128xf32>
    %290 = math.tanh %284 : vector<2x128xf32>
    %291 = vector.extract_strided_slice %289 {offsets = [0, 0], sizes = [2, 32], strides = [1, 1]} : vector<2x128xf32> to vector<2x32xf32>
    %292 = vector.extract_strided_slice %289 {offsets = [0, 32], sizes = [2, 32], strides = [1, 1]} : vector<2x128xf32> to vector<2x32xf32>
    %293 = vector.extract_strided_slice %290 {offsets = [0, 64], sizes = [2, 32], strides = [1, 1]} : vector<2x128xf32> to vector<2x32xf32>
    %294 = vector.extract_strided_slice %289 {offsets = [0, 96], sizes = [2, 32], strides = [1, 1]} : vector<2x128xf32> to vector<2x32xf32>
    %295 = arith.mulf %292, %259 : vector<2x32xf32>
    %296 = arith.mulf %291, %293 : vector<2x32xf32>
    %297 = arith.addf %295, %296 : vector<2x32xf32>
    %298 = math.tanh %297 : vector<2x32xf32>
    %299 = arith.mulf %294, %298 : vector<2x32xf32>
    %300 = tpu.concatenate %299, %280 in 1 : vector<2x32xf32>, vector<2x32xf32> -> vector<2x64xf32>
    %cst_46 = arith.constant dense<0.000000e+00> : vector<2x128xf32>
    %301 = tpu.matmul %300, %3, %cst_46 {dimension_numbers = #tpu.dot_dimension_numbers<[1], [0], [0], [1], [0, 0, 1, 1], [], []>} : vector<2x64xf32>, vector<64x128xf32>, vector<2x128xf32> -> vector<2x128xf32>
    %302 = vector.broadcast %4 : vector<1x128xf32> to vector<2x128xf32>
    %303 = arith.addf %301, %302 : vector<2x128xf32>
    %304 = arith.negf %303 : vector<2x128xf32>
    %305 = math.exp %304 : vector<2x128xf32>
    %cst_47 = arith.constant 1.000000e+00 : f32
    %306 = vector.broadcast %cst_47 : f32 to vector<2x128xf32>
    %307 = arith.addf %306, %305 : vector<2x128xf32>
    %308 = arith.divf %306, %307 : vector<2x128xf32>
    %309 = math.tanh %303 : vector<2x128xf32>
    %310 = vector.extract_strided_slice %308 {offsets = [0, 0], sizes = [2, 32], strides = [1, 1]} : vector<2x128xf32> to vector<2x32xf32>
    %311 = vector.extract_strided_slice %308 {offsets = [0, 32], sizes = [2, 32], strides = [1, 1]} : vector<2x128xf32> to vector<2x32xf32>
    %312 = vector.extract_strided_slice %309 {offsets = [0, 64], sizes = [2, 32], strides = [1, 1]} : vector<2x128xf32> to vector<2x32xf32>
    %313 = vector.extract_strided_slice %308 {offsets = [0, 96], sizes = [2, 32], strides = [1, 1]} : vector<2x128xf32> to vector<2x32xf32>
    %314 = arith.mulf %311, %278 : vector<2x32xf32>
    %315 = arith.mulf %310, %312 : vector<2x32xf32>
    %316 = arith.addf %314, %315 : vector<2x32xf32>
    %317 = math.tanh %316 : vector<2x32xf32>
    %318 = arith.mulf %313, %317 : vector<2x32xf32>
    %c0_48 = arith.constant 0 : index
    %c0_49 = arith.constant 0 : index
    %319 = vector.load %arg6[%c0_48, %c0_49] : memref<1x32xf32, #tpu.memory_space<vmem>>, vector<1x32xf32>
    %320 = vector.broadcast %319 : vector<1x32xf32> to vector<2x32xf32>
    %321 = arith.mulf %318, %320 : vector<2x32xf32>
    %cst_50 = arith.constant dense<0.000000e+00> : vector<2xf32>
    %322 = vector.multi_reduction <add>, %321, %cst_50 [1] : vector<2x32xf32> to vector<2xf32>
    %323 = vector.shape_cast %322 : vector<2xf32> to vector<2x1xf32>
    %c0_51 = arith.constant 0 : index
    %c0_52 = arith.constant 0 : index
    %324 = vector.load %arg7[%c0_51, %c0_52] : memref<1x1xf32, #tpu.memory_space<vmem>>, vector<1x1xf32>
    %325 = vector.broadcast %324 : vector<1x1xf32> to vector<2x1xf32>
    %326 = arith.addf %323, %325 : vector<2x1xf32>
    %c0_53 = arith.constant 0 : index
    %c0_54 = arith.constant 0 : index
    %327 = vector.load %arg8[%c0_53, %c0_54] : memref<2x1xf32, #tpu.memory_space<vmem>>, vector<2x1xf32>
    tpu.vector_store %arg8[%c0_53, %c0_54], %326 {strides = array<i32>} : memref<2x1xf32, #tpu.memory_space<vmem>>, vector<2x1xf32>,
    return
  }
}

</mosaic_0001>

<llo_original>
// kernel: tpu_custom_call.1
$region0: #{tpu_custom_call.1}
  #allocation0 [shape = 'u32[]', space=smem, size = 0x4, offset = 0x4, fixed_abs, tag = 'smem constant byte address 0x4 - core index']
  #allocation1 [shape = 'u32[144,128]{1,0:T(1,128)}', space=vmem, size = 0x12000, scoped, tag = 'internal scratch']
  #allocation2 [shape = 'f32[1,1]{1,0:T(1,128)S(1)}', space=vmem, size = 0x200, scoped, tag = 'scoped memory for tpu_custom_call.1']
  %s0 = inlined_call_operand.vmem [shape: f32[2,8,4], index: 0, kind: input, shape index: {}]
  %s1 = inlined_call_operand.hbm [shape: f32[4,128], index: 1, kind: input, shape index: {}]
  %s2 = inlined_call_operand.vmem [shape: f32[32,128], index: 2, kind: input, shape index: {}]
  %s3 = inlined_call_operand.vmem [shape: f32[1,128], index: 3, kind: input, shape index: {}]
  %s4 = inlined_call_operand.hbm [shape: f32[64,128], index: 4, kind: input, shape index: {}]
  %s5 = inlined_call_operand.vmem [shape: f32[1,128], index: 5, kind: input, shape index: {}]
  %s6 = inlined_call_operand.vmem [shape: f32[1,32], index: 6, kind: input, shape index: {}]
  %s7 = inlined_call_operand.<no memory space> [shape: f32[1,1], index: 7, kind: input, shape index: {}]
  %s8 = inlined_call_operand.vmem [shape: f32[2,1], index: 8, kind: output, shape index: {}]
  %s9 = sld [smem:[#allocation0]]
  $region50: #{tpu_custom_call.1} parent=0
    _
  %s11 = ssub.s32 1, %s9
  %s12 = scalar_select 0, %s11, %s9
  %v13 = vstv %s7
  %14 = vst [vmem:[#allocation2] sm:$0x1] %v13
  $region1: #{tpu_custom_call.1} parent=0
    #allocation3 [shape = 'u8[2048]{0}', space=vmem, size = 0x800, scoped, tag = 'input window, operand 1, single buffered']
    #allocation4 [shape = 's32[1]{0}', space=sflag, size = 0x4, scoped, tag = 'scoped memory for tpu_custom_call.1']
    #allocation5 [shape = 'u8[32768]{0}', space=vmem, size = 0x8000, scoped, tag = 'input window, operand 4, single buffered']
    #allocation6 [shape = 's32[1]{0}', space=sflag, size = 0x4, scoped, tag = 'scoped memory for tpu_custom_call.1']
    %15 = vsyncpa [#allocation4], 0
    %16 = vsyncpa [#allocation6], 0
    // Predicated region
    $region2: #{tpu_custom_call.1} parent=1 // pred_check
      _
    $region3: #{tpu_custom_call.1} parent=1 // pred_check_branch
      %18 = sbr.rel (0) target = $region5
    $region4: #{tpu_custom_call.1} parent=1 // pred_region
      _
    $region5: #{tpu_custom_call.1} parent=1 // pred_fallthru
      _
    // Predicated region
    $region6: #{tpu_custom_call.1} parent=1 // pred_check
      _
    $region7: #{tpu_custom_call.1} parent=1 // pred_check_branch
      %20 = sbr.rel (0) target = $region9
    $region8: #{tpu_custom_call.1} parent=1 // pred_region
      %s22 = ssub.s32 64, 64
      %23 = vsyncadd [#allocation4], %s22
      %s25 = sshll.u32 [#allocation3], 4
      %s26 = int_to_ptr.vmem [resolvable:$true] %s25
      %28 = dma.hbm_to_vmem [thread:$0]  %s1, 64, %s26, [#allocation4]
    $region9: #{tpu_custom_call.1} parent=1 // pred_fallthru
      _
    // Predicated region
    $region10: #{tpu_custom_call.1} parent=1 // pred_check
      _
    $region11: #{tpu_custom_call.1} parent=1 // pred_check_branch
      %30 = sbr.rel (0) target = $region13
    $region12: #{tpu_custom_call.1} parent=1 // pred_region
      _
    $region13: #{tpu_custom_call.1} parent=1 // pred_fallthru
      _
    // Predicated region
    $region14: #{tpu_custom_call.1} parent=1 // pred_check
      _
    $region15: #{tpu_custom_call.1} parent=1 // pred_check_branch
      %32 = sbr.rel (0) target = $region17
    $region16: #{tpu_custom_call.1} parent=1 // pred_region
      _
    $region17: #{tpu_custom_call.1} parent=1 // pred_fallthru
      _
    // Predicated region
    $region18: #{tpu_custom_call.1} parent=1 // pred_check
      _
    $region19: #{tpu_custom_call.1} parent=1 // pred_check_branch
      %34 = sbr.rel (0) target = $region21
    $region20: #{tpu_custom_call.1} parent=1 // pred_region
      %s36 = ssub.s32 1024, 1024
      %37 = vsyncadd [#allocation6], %s36
      %s38 = sshll.u32 [#allocation5], 4
      %s39 = int_to_ptr.vmem [resolvable:$true] %s38
      %44 = dma.hbm_to_vmem [thread:$0]  %s4, 1024, %s39, [#allocation6], 128, 128, 8
    $region21: #{tpu_custom_call.1} parent=1 // pred_fallthru
      _
    // Predicated region
    $region22: #{tpu_custom_call.1} parent=1 // pred_check
      _
    $region23: #{tpu_custom_call.1} parent=1 // pred_check_branch
      %46 = sbr.rel (0) target = $region25
    $region24: #{tpu_custom_call.1} parent=1 // pred_region
      _
    $region25: #{tpu_custom_call.1} parent=1 // pred_fallthru
      _
    // Predicated region
    $region26: #{tpu_custom_call.1} parent=1 // pred_check
      _
    $region27: #{tpu_custom_call.1} parent=1 // pred_check_branch
      %48 = sbr.rel (0) target = $region29
    $region28: #{tpu_custom_call.1} parent=1 // pred_region
      _
    $region29: #{tpu_custom_call.1} parent=1 // pred_fallthru
      _
    // Predicated region
    $region30: #{tpu_custom_call.1} parent=1 // pred_check
      _
    $region31: #{tpu_custom_call.1} parent=1 // pred_check_branch
      %50 = sbr.rel (0) target = $region33
    $region32: #{tpu_custom_call.1} parent=1 // pred_region
      _
    $region33: #{tpu_custom_call.1} parent=1 // pred_fallthru
      _
    // Predicated region
    $region34: #{tpu_custom_call.1} parent=1 // pred_check
      _
    $region35: #{tpu_custom_call.1} parent=1 // pred_check_branch
      %52 = sbr.rel (0) target = $region37
    $region36: #{tpu_custom_call.1} parent=1 // pred_region
      %53 = dma.done [#allocation4], 64
    $region37: #{tpu_custom_call.1} parent=1 // pred_fallthru
      _
    // Predicated region
    $region38: #{tpu_custom_call.1} parent=1 // pred_check
      _
    $region39: #{tpu_custom_call.1} parent=1 // pred_check_branch
      %55 = sbr.rel (0) target = $region41
    $region40: #{tpu_custom_call.1} parent=1 // pred_region
      %56 = dma.done [#allocation6], 1024
    $region41: #{tpu_custom_call.1} parent=1 // pred_fallthru
      _
    %v57 = vld [vmem:[#allocation3] sm:$0xf]
    %v58 = vld [vmem:[%s2] sm:$0xff]
    %v59 = vld [vmem:[%s2 + $0x8] sm:$0xff]
    %v60 = vld [vmem:[%s2 + $0x10] sm:$0xff]
    %v61 = vld [vmem:[%s2 + $0x18] sm:$0xff]
    %v62 = vld [vmem:[%s3] sm:$0x1]
    %v63 = vld [vmem:[#allocation5] sm:$0xff]
    %v64 = vld [vmem:[#allocation5 + $0x8] sm:$0xff]
    %v65 = vld [vmem:[#allocation5 + $0x10] sm:$0xff]
    %v66 = vld [vmem:[#allocation5 + $0x18] sm:$0xff]
    %v67 = vld [vmem:[#allocation5 + $0x20] sm:$0xff]
    %v68 = vld [vmem:[#allocation5 + $0x28] sm:$0xff]
    %v69 = vld [vmem:[#allocation5 + $0x30] sm:$0xff]
    %v70 = vld [vmem:[#allocation5 + $0x38] sm:$0xff]
    %v71 = vld [vmem:[%s5] sm:$0x1]
    %v72 = vld [vmem:[%s0] sm:$0xff]
    %v73 = vld [vmem:[%s0 + $0x8] sm:$0xff]
    %v75 = vlaneseq
    %v76 = vshrl.u32 %v75, 7
    %v77 = vsub.s32 0, %v76
    %v78 = vrot.slane %v62, %v77
    %vm80 = vcmask 31744
    %v82 = vsel %vm80, %v72, 0
    %v85 = vsel %vm80, %v73, 0
    %vm87 = vcmask 1043456
    %v89 = vsel %vm87, %v57, 0
    %91 = vmatprep.subr.mxu0 0.0
    %92 = vmatpush1.msra.mxu0 %v89
    %93 = vmatprep.subr.mxu0 0.0
    %94 = vmatpush1.msra.mxu0 0.0
    %95 = vmatprep.subr.mxu0 0.0
    %96 = vmatpush1.msra.mxu0 0.0
    %97 = vmatprep.subr.mxu0 0.0
    %98 = vmatpush1.msra.mxu0 0.0
    %99 = vmatprep.subr.mxu0 0.0
    %100 = vmatpush1.msra.mxu0 0.0
    %101 = vmatprep.subr.mxu0 0.0
    %102 = vmatpush1.msra.mxu0 0.0
    %103 = vmatprep.subr.mxu0 0.0
    %104 = vmatpush1.msra.mxu0 0.0
    %105 = vmatprep.subr.mxu0 0.0
    %106 = vmatpush1.msra.mxu0 0.0
    %107 = vmatprep.subr.mxu0 0.0
    %108 = vmatpush1.msra.mxu0 0.0
    %109 = vmatprep.subr.mxu0 0.0
    %110 = vmatpush1.msra.mxu0 0.0
    %111 = vmatprep.subr.mxu0 0.0
    %112 = vmatpush1.msra.mxu0 0.0
    %113 = vmatprep.subr.mxu0 0.0
    %114 = vmatpush1.msra.mxu0 0.0
    %115 = vmatprep.subr.mxu0 0.0
    %116 = vmatpush1.msra.mxu0 0.0
    %117 = vmatprep.subr.mxu0 0.0
    %118 = vmatpush1.msra.mxu0 0.0
    %119 = vmatprep.subr.mxu0 0.0
    %120 = vmatpush1.msra.mxu0 0.0
    %121 = vmatprep.subr.mxu0 0.0
    %122 = vmatpush1.msra.mxu0 0.0
    %123 = vmatprep.subr.mxu0 0.0
    %124 = vmatpush1.msra.mxu0 0.0
    %125 = vmatprep.subr.mxu0 0.0
    %126 = vmatpush1.msra.mxu0 0.0
    %127 = vmatprep.subr.mxu0 0.0
    %128 = vmatpush1.msra.mxu0 0.0
    %129 = vmatprep.subr.mxu0 0.0
    %130 = vmatpush1.msra.mxu0 0.0
    %131 = vmatprep.subr.mxu0 0.0
    %132 = vmatpush1.msra.mxu0 0.0
    %133 = vmatprep.subr.mxu0 0.0
    %134 = vmatpush1.msra.mxu0 0.0
    %135 = vmatprep.subr.mxu0 0.0
    %136 = vmatpush1.msra.mxu0 0.0
    %137 = vmatprep.subr.mxu0 0.0
    %138 = vmatpush1.msra.mxu0 0.0
    %139 = vmatprep.subr.mxu0 0.0
    %140 = vmatpush1.msra.mxu0 0.0
    %141 = vmatprep.subr.mxu0 0.0
    %142 = vmatpush1.msra.mxu0 0.0
    %143 = vmatprep.subr.mxu0 0.0
    %144 = vmatpush1.msra.mxu0 0.0
    %145 = vmatprep.subr.mxu0 0.0
    %146 = vmatpush1.msra.mxu0 0.0
    %147 = vmatprep.subr.mxu0 0.0
    %148 = vmatpush1.msra.mxu0 0.0
    %149 = vmatprep.subr.mxu0 0.0
    %150 = vmatpush1.msra.mxu0 0.0
    %151 = vmatprep.subr.mxu0 0.0
    %152 = vmatpush1.msra.mxu0 0.0
    %153 = vmatprep.subr.mxu0 0.0
    %154 = vmatpush1.msra.mxu0 0.0
    %155 = vmatprep.mubr.f32.mxu0 0.0
    %156 = vmatmul.mubr.f32.gmra.mrb[0].mxu0 %v82
    %v157 = vpop.f32.mrb[0].mxu0
    %v158 = vadd.f32 %v78, %v157
    %v159 = vpop.f32.mrb[0].mxu0
    %160 = vmatprep.mubr.f32.mxu0 0.0
    %161 = vmatmul.mubr.f32.gmra.mrb[0].mxu0 %v85
    %v162 = vpop.f32.mrb[0].mxu0
    %v163 = vadd.f32 %v78, %v162
    %v164 = vpop.f32.mrb[0].mxu0
    %165 = vdwg.mxu0
    %vm166 = vcmask 261120
    %v168 = vsel %vm166, 0.0, 0
    %170 = vmatprep.subr.mxu0 0.0
    %171 = vmatpush1.msra.mxu0 %v58
    %172 = vmatprep.subr.mxu0 0.0
    %173 = vmatpush1.msra.mxu0 %v59
    %174 = vmatprep.subr.mxu0 0.0
    %175 = vmatpush1.msra.mxu0 %v60
    %176 = vmatprep.subr.mxu0 0.0
    %177 = vmatpush1.msra.mxu0 %v61
    %178 = vmatprep.subr.mxu0 0.0
    %179 = vmatpush1.msra.mxu0 0.0
    %180 = vmatprep.subr.mxu0 0.0
    %181 = vmatpush1.msra.mxu0 0.0
    %182 = vmatprep.subr.mxu0 0.0
    %183 = vmatpush1.msra.mxu0 0.0
    %184 = vmatprep.subr.mxu0 0.0
    %185 = vmatpush1.msra.mxu0 0.0
    %186 = vmatprep.subr.mxu0 0.0
    %187 = vmatpush1.msra.mxu0 0.0
    %188 = vmatprep.subr.mxu0 0.0
    %189 = vmatpush1.msra.mxu0 0.0
    %190 = vmatprep.subr.mxu0 0.0
    %191 = vmatpush1.msra.mxu0 0.0
    %192 = vmatprep.subr.mxu0 0.0
    %193 = vmatpush1.msra.mxu0 0.0
    %194 = vmatprep.subr.mxu0 0.0
    %195 = vmatpush1.msra.mxu0 0.0
    %196 = vmatprep.subr.mxu0 0.0
    %197 = vmatpush1.msra.mxu0 0.0
    %198 = vmatprep.subr.mxu0 0.0
    %199 = vmatpush1.msra.mxu0 0.0
    %200 = vmatprep.subr.mxu0 0.0
    %201 = vmatpush1.msra.mxu0 0.0
    %202 = vmatprep.subr.mxu0 0.0
    %203 = vmatpush1.msra.mxu0 0.0
    %204 = vmatprep.subr.mxu0 0.0
    %205 = vmatpush1.msra.mxu0 0.0
    %206 = vmatprep.subr.mxu0 0.0
    %207 = vmatpush1.msra.mxu0 0.0
    %208 = vmatprep.subr.mxu0 0.0
    %209 = vmatpush1.msra.mxu0 0.0
    %210 = vmatprep.subr.mxu0 0.0
    %211 = vmatpush1.msra.mxu0 0.0
    %212 = vmatprep.subr.mxu0 0.0
    %213 = vmatpush1.msra.mxu0 0.0
    %214 = vmatprep.subr.mxu0 0.0
    %215 = vmatpush1.msra.mxu0 0.0
    %216 = vmatprep.subr.mxu0 0.0
    %217 = vmatpush1.msra.mxu0 0.0
    %218 = vmatprep.subr.mxu0 0.0
    %219 = vmatpush1.msra.mxu0 0.0
    %220 = vmatprep.subr.mxu0 0.0
    %221 = vmatpush1.msra.mxu0 0.0
    %222 = vmatprep.subr.mxu0 0.0
    %223 = vmatpush1.msra.mxu0 0.0
    %224 = vmatprep.subr.mxu0 0.0
    %225 = vmatpush1.msra.mxu0 0.0
    %226 = vmatprep.subr.mxu0 0.0
    %227 = vmatpush1.msra.mxu0 0.0
    %228 = vmatprep.subr.mxu0 0.0
    %229 = vmatpush1.msra.mxu0 0.0
    %230 = vmatprep.subr.mxu0 0.0
    %231 = vmatpush1.msra.mxu0 0.0
    %232 = vmatprep.subr.mxu0 0.0
    %233 = vmatpush1.msra.mxu0 0.0
    %234 = vmatprep.mubr.f32.mxu0 0.0
    %235 = vmatmul.mubr.f32.gmra.mrb[0].mxu0 %v168
    %v236 = vpop.f32.mrb[0].mxu0
    %v237 = vadd.f32 0.0, %v236
    %v238 = vpop.f32.mrb[0].mxu0
    %239 = vdwg.mxu0
    %v241 = vrot.slane %v237, 1
    %v244 = vadd.f32 %v158, %v237
    %v245 = vadd.f32 %v163, %v241
    %v246 = vxor.u32 %v244, 2147483648
    %v247 = vxor.u32 %v245, 2147483648
    %v248 = vmul.f32 %v246, 1.442695
    %v249 = vpow.pop %v248
    %v250 = vmul.f32 %v247, 1.442695
    %v251 = vpow.pop %v250
    %v252 = vadd.f32 %v249, 1.0
    %v253 = vadd.f32 %v251, 1.0
    %v254 = vrcp.pop %v252
    %v255 = vmul.f32 1.0, %v254
    %v256 = vrcp.pop %v253
    %v257 = vmul.f32 1.0, %v256
    %v258 = vtanh.pop %v244
    %v259 = vtanh.pop %v245
    %v260 = vmul.f32 %v255, 0.0
    %v261 = vmul.f32 %v257, 0.0
    %264 = vrot.lane.b32.xlu0 %v258, 64
    %v265 = vpop.permute.xlu0 %264
    %266 = vrot.lane.b32.xlu0 %v259, 64
    %v267 = vpop.permute.xlu0 %266
    %v270 = vmul.f32 %v255, %v265
    %v271 = vmul.f32 %v257, %v267
    %274 = vrot.lane.b32.xlu0 %v270, 32
    %v275 = vpop.permute.xlu0 %274
    %276 = vrot.lane.b32.xlu0 %v271, 32
    %v277 = vpop.permute.xlu0 %276
    %v280 = vadd.f32 %v260, %v275
    %v281 = vadd.f32 %v261, %v277
    %v282 = vtanh.pop %v280
    %v283 = vtanh.pop %v281
    %286 = vrot.lane.b32.xlu0 %v282, 64
    %v287 = vpop.permute.xlu0 %286
    %288 = vrot.lane.b32.xlu0 %v283, 64
    %v289 = vpop.permute.xlu0 %288
    %v292 = vmul.f32 %v255, %v287
    %v293 = vmul.f32 %v257, %v289
    %v296 = vrot.slane %v293, 7
    %vm297 = vcmask 1041409
    %v298 = vsel %vm297, %v296, %v292
    %299 = vrot.lane.b32.xlu0 %v298, 32
    %v300 = vpop.permute.xlu0 %299
    %v302 = vsel %vm166, %v300, 0.0
    %v304 = vlaneseq
    %v305 = vshrl.u32 %v304, 7
    %v306 = vsub.s32 0, %v305
    %v307 = vrot.slane %v71, %v306
    %vm309 = vcmask 523264
    %v311 = vsel %vm309, %v302, 0
    %313 = vmatprep.subr.mxu0 0.0
    %314 = vmatpush1.msra.mxu0 %v63
    %315 = vmatprep.subr.mxu0 0.0
    %316 = vmatpush1.msra.mxu0 %v64
    %317 = vmatprep.subr.mxu0 0.0
    %318 = vmatpush1.msra.mxu0 %v65
    %319 = vmatprep.subr.mxu0 0.0
    %320 = vmatpush1.msra.mxu0 %v66
    %321 = vmatprep.subr.mxu0 0.0
    %322 = vmatpush1.msra.mxu0 %v67
    %323 = vmatprep.subr.mxu0 0.0
    %324 = vmatpush1.msra.mxu0 %v68
    %325 = vmatprep.subr.mxu0 0.0
    %326 = vmatpush1.msra.mxu0 %v69
    %327 = vmatprep.subr.mxu0 0.0
    %328 = vmatpush1.msra.mxu0 %v70
    %329 = vmatprep.subr.mxu0 0.0
    %330 = vmatpush1.msra.mxu0 0.0
    %331 = vmatprep.subr.mxu0 0.0
    %332 = vmatpush1.msra.mxu0 0.0
    %333 = vmatprep.subr.mxu0 0.0
    %334 = vmatpush1.msra.mxu0 0.0
    %335 = vmatprep.subr.mxu0 0.0
    %336 = vmatpush1.msra.mxu0 0.0
    %337 = vmatprep.subr.mxu0 0.0
    %338 = vmatpush1.msra.mxu0 0.0
    %339 = vmatprep.subr.mxu0 0.0
    %340 = vmatpush1.msra.mxu0 0.0
    %341 = vmatprep.subr.mxu0 0.0
    %342 = vmatpush1.msra.mxu0 0.0
    %343 = vmatprep.subr.mxu0 0.0
    %344 = vmatpush1.msra.mxu0 0.0
    %345 = vmatprep.subr.mxu0 0.0
    %346 = vmatpush1.msra.mxu0 0.0
    %347 = vmatprep.subr.mxu0 0.0
    %348 = vmatpush1.msra.mxu0 0.0
    %349 = vmatprep.subr.mxu0 0.0
    %350 = vmatpush1.msra.mxu0 0.0
    %351 = vmatprep.subr.mxu0 0.0
    %352 = vmatpush1.msra.mxu0 0.0
    %353 = vmatprep.subr.mxu0 0.0
    %354 = vmatpush1.msra.mxu0 0.0
    %355 = vmatprep.subr.mxu0 0.0
    %356 = vmatpush1.msra.mxu0 0.0
    %357 = vmatprep.subr.mxu0 0.0
    %358 = vmatpush1.msra.mxu0 0.0
    %359 = vmatprep.subr.mxu0 0.0
    %360 = vmatpush1.msra.mxu0 0.0
    %361 = vmatprep.subr.mxu0 0.0
    %362 = vmatpush1.msra.mxu0 0.0
    %363 = vmatprep.subr.mxu0 0.0
    %364 = vmatpush1.msra.mxu0 0.0
    %365 = vmatprep.subr.mxu0 0.0
    %366 = vmatpush1.msra.mxu0 0.0
    %367 = vmatprep.subr.mxu0 0.0
    %368 = vmatpush1.msra.mxu0 0.0
    %369 = vmatprep.subr.mxu0 0.0
    %370 = vmatpush1.msra.mxu0 0.0
    %371 = vmatprep.subr.mxu0 0.0
    %372 = vmatpush1.msra.mxu0 0.0
    %373 = vmatprep.subr.mxu0 0.0
    %374 = vmatpush1.msra.mxu0 0.0
    %375 = vmatprep.subr.mxu0 0.0
    %376 = vmatpush1.msra.mxu0 0.0
    %377 = vmatprep.mubr.f32.mxu0 0.0
    %378 = vmatmul.mubr.f32.gmra.mrb[0].mxu0 %v311
    %v379 = vpop.f32.mrb[0].mxu0
    %v380 = vadd.f32 %v307, %v379
    %v381 = vpop.f32.mrb[0].mxu0
    %382 = vdwg.mxu0
    %v383 = vxor.u32 %v380, 2147483648
    %v384 = vmul.f32 %v383, 1.442695
    %v385 = vpow.pop %v384
    %v386 = vadd.f32 %v385, 1.0
    %v387 = vrcp.pop %v386
    %v388 = vmul.f32 1.0, %v387
    %v389 = vtanh.pop %v380
    %v390 = vmul.f32 %v388, 0.0
    %392 = vrot.lane.b32.xlu0 %v389, 64
    %v393 = vpop.permute.xlu0 %392
    %v395 = vmul.f32 %v388, %v393
    %397 = vrot.lane.b32.xlu0 %v395, 32
    %v398 = vpop.permute.xlu0 %397
    %v400 = vadd.f32 %v390, %v398
    %v401 = vtanh.pop %v400
    %403 = vrot.lane.b32.xlu0 %v401, 64
    %v404 = vpop.permute.xlu0 %403
    %v406 = vmul.f32 %v388, %v404
    %v407 = vsel %vm166, %v300, 0
    %409 = vmatprep.subr.mxu0 0.0
    %410 = vmatpush1.msra.mxu0 %v58
    %411 = vmatprep.subr.mxu0 0.0
    %412 = vmatpush1.msra.mxu0 %v59
    %413 = vmatprep.subr.mxu0 0.0
    %414 = vmatpush1.msra.mxu0 %v60
    %415 = vmatprep.subr.mxu0 0.0
    %416 = vmatpush1.msra.mxu0 %v61
    %417 = vmatprep.subr.mxu0 0.0
    %418 = vmatpush1.msra.mxu0 0.0
    %419 = vmatprep.subr.mxu0 0.0
    %420 = vmatpush1.msra.mxu0 0.0
    %421 = vmatprep.subr.mxu0 0.0
    %422 = vmatpush1.msra.mxu0 0.0
    %423 = vmatprep.subr.mxu0 0.0
    %424 = vmatpush1.msra.mxu0 0.0
    %425 = vmatprep.subr.mxu0 0.0
    %426 = vmatpush1.msra.mxu0 0.0
    %427 = vmatprep.subr.mxu0 0.0
    %428 = vmatpush1.msra.mxu0 0.0
    %429 = vmatprep.subr.mxu0 0.0
    %430 = vmatpush1.msra.mxu0 0.0
    %431 = vmatprep.subr.mxu0 0.0
    %432 = vmatpush1.msra.mxu0 0.0
    %433 = vmatprep.subr.mxu0 0.0
    %434 = vmatpush1.msra.mxu0 0.0
    %435 = vmatprep.subr.mxu0 0.0
    %436 = vmatpush1.msra.mxu0 0.0
    %437 = vmatprep.subr.mxu0 0.0
    %438 = vmatpush1.msra.mxu0 0.0
    %439 = vmatprep.subr.mxu0 0.0
    %440 = vmatpush1.msra.mxu0 0.0
    %441 = vmatprep.subr.mxu0 0.0
    %442 = vmatpush1.msra.mxu0 0.0
    %443 = vmatprep.subr.mxu0 0.0
    %444 = vmatpush1.msra.mxu0 0.0
    %445 = vmatprep.subr.mxu0 0.0
    %446 = vmatpush1.msra.mxu0 0.0
    %447 = vmatprep.subr.mxu0 0.0
    %448 = vmatpush1.msra.mxu0 0.0
    %449 = vmatprep.subr.mxu0 0.0
    %450 = vmatpush1.msra.mxu0 0.0
    %451 = vmatprep.subr.mxu0 0.0
    %452 = vmatpush1.msra.mxu0 0.0
    %453 = vmatprep.subr.mxu0 0.0
    %454 = vmatpush1.msra.mxu0 0.0
    %455 = vmatprep.subr.mxu0 0.0
    %456 = vmatpush1.msra.mxu0 0.0
    %457 = vmatprep.subr.mxu0 0.0
    %458 = vmatpush1.msra.mxu0 0.0
    %459 = vmatprep.subr.mxu0 0.0
    %460 = vmatpush1.msra.mxu0 0.0
    %461 = vmatprep.subr.mxu0 0.0
    %462 = vmatpush1.msra.mxu0 0.0
    %463 = vmatprep.subr.mxu0 0.0
    %464 = vmatpush1.msra.mxu0 0.0
    %465 = vmatprep.subr.mxu0 0.0
    %466 = vmatpush1.msra.mxu0 0.0
    %467 = vmatprep.subr.mxu0 0.0
    %468 = vmatpush1.msra.mxu0 0.0
    %469 = vmatprep.subr.mxu0 0.0
    %470 = vmatpush1.msra.mxu0 0.0
    %471 = vmatprep.subr.mxu0 0.0
    %472 = vmatpush1.msra.mxu0 0.0
    %473 = vmatprep.mubr.f32.mxu0 0.0
    %474 = vmatmul.mubr.f32.gmra.mrb[0].mxu0 %v407
    %v475 = vpop.f32.mrb[0].mxu0
    %v476 = vadd.f32 0.0, %v475
    %v477 = vpop.f32.mrb[0].mxu0
    %478 = vdwg.mxu0
    %v480 = vrot.slane %v476, 7
    %v483 = vadd.f32 %v158, %v480
    %v484 = vadd.f32 %v163, %v476
    %v485 = vxor.u32 %v483, 2147483648
    %v486 = vxor.u32 %v484, 2147483648
    %v487 = vmul.f32 %v485, 1.442695
    %v488 = vpow.pop %v487
    %v489 = vmul.f32 %v486, 1.442695
    %v490 = vpow.pop %v489
    %v491 = vadd.f32 %v488, 1.0
    %v492 = vadd.f32 %v490, 1.0
    %v493 = vrcp.pop %v491
    %v494 = vmul.f32 1.0, %v493
    %v495 = vrcp.pop %v492
    %v496 = vmul.f32 1.0, %v495
    %v497 = vtanh.pop %v483
    %v498 = vtanh.pop %v484
    %v501 = vrot.slane %v280, 7
    %v502 = vrot.slane %v281, 7
    %v505 = vmul.f32 %v494, %v501
    %v506 = vmul.f32 %v496, %v502
    %509 = vrot.lane.b32.xlu0 %v497, 64
    %v510 = vpop.permute.xlu0 %509
    %511 = vrot.lane.b32.xlu0 %v498, 64
    %v512 = vpop.permute.xlu0 %511
    %v515 = vmul.f32 %v494, %v510
    %v516 = vmul.f32 %v496, %v512
    %519 = vrot.lane.b32.xlu0 %v515, 32
    %v520 = vpop.permute.xlu0 %519
    %521 = vrot.lane.b32.xlu0 %v516, 32
    %v522 = vpop.permute.xlu0 %521
    %v525 = vadd.f32 %v505, %v520
    %v526 = vadd.f32 %v506, %v522
    %v527 = vtanh.pop %v525
    %v528 = vtanh.pop %v526
    %531 = vrot.lane.b32.xlu0 %v527, 64
    %v532 = vpop.permute.xlu0 %531
    %533 = vrot.lane.b32.xlu0 %v528, 64
    %v534 = vpop.permute.xlu0 %533
    %v537 = vmul.f32 %v494, %v532
    %v538 = vmul.f32 %v496, %v534
    %v541 = vrot.slane %v538, 7
    %vm542 = vcmask 1042434
    %v543 = vsel %vm542, %v541, %v537
    %544 = vrot.lane.b32.xlu0 %v543, 32
    %v545 = vpop.permute.xlu0 %544
    %v548 = vrot.slane %v406, 7
    %549 = vrot.lane.b32.xlu0 %v548, 64
    %v550 = vpop.permute.xlu0 %549
    %v552 = vsel %vm166, %v545, %v550
    %v554 = vrot.slane %v552, 1
    %v555 = vsel %vm309, %v554, 0
    %557 = vmatprep.subr.mxu0 0.0
    %558 = vmatpush1.msra.mxu0 %v63
    %559 = vmatprep.subr.mxu0 0.0
    %560 = vmatpush1.msra.mxu0 %v64
    %561 = vmatprep.subr.mxu0 0.0
    %562 = vmatpush1.msra.mxu0 %v65
    %563 = vmatprep.subr.mxu0 0.0
    %564 = vmatpush1.msra.mxu0 %v66
    %565 = vmatprep.subr.mxu0 0.0
    %566 = vmatpush1.msra.mxu0 %v67
    %567 = vmatprep.subr.mxu0 0.0
    %568 = vmatpush1.msra.mxu0 %v68
    %569 = vmatprep.subr.mxu0 0.0
    %570 = vmatpush1.msra.mxu0 %v69
    %571 = vmatprep.subr.mxu0 0.0
    %572 = vmatpush1.msra.mxu0 %v70
    %573 = vmatprep.subr.mxu0 0.0
    %574 = vmatpush1.msra.mxu0 0.0
    %575 = vmatprep.subr.mxu0 0.0
    %576 = vmatpush1.msra.mxu0 0.0
    %577 = vmatprep.subr.mxu0 0.0
    %578 = vmatpush1.msra.mxu0 0.0
    %579 = vmatprep.subr.mxu0 0.0
    %580 = vmatpush1.msra.mxu0 0.0
    %581 = vmatprep.subr.mxu0 0.0
    %582 = vmatpush1.msra.mxu0 0.0
    %583 = vmatprep.subr.mxu0 0.0
    %584 = vmatpush1.msra.mxu0 0.0
    %585 = vmatprep.subr.mxu0 0.0
    %586 = vmatpush1.msra.mxu0 0.0
    %587 = vmatprep.subr.mxu0 0.0
    %588 = vmatpush1.msra.mxu0 0.0
    %589 = vmatprep.subr.mxu0 0.0
    %590 = vmatpush1.msra.mxu0 0.0
    %591 = vmatprep.subr.mxu0 0.0
    %592 = vmatpush1.msra.mxu0 0.0
    %593 = vmatprep.subr.mxu0 0.0
    %594 = vmatpush1.msra.mxu0 0.0
    %595 = vmatprep.subr.mxu0 0.0
    %596 = vmatpush1.msra.mxu0 0.0
    %597 = vmatprep.subr.mxu0 0.0
    %598 = vmatpush1.msra.mxu0 0.0
    %599 = vmatprep.subr.mxu0 0.0
    %600 = vmatpush1.msra.mxu0 0.0
    %601 = vmatprep.subr.mxu0 0.0
    %602 = vmatpush1.msra.mxu0 0.0
    %603 = vmatprep.subr.mxu0 0.0
    %604 = vmatpush1.msra.mxu0 0.0
    %605 = vmatprep.subr.mxu0 0.0
    %606 = vmatpush1.msra.mxu0 0.0
    %607 = vmatprep.subr.mxu0 0.0
    %608 = vmatpush1.msra.mxu0 0.0
    %609 = vmatprep.subr.mxu0 0.0
    %610 = vmatpush1.msra.mxu0 0.0
    %611 = vmatprep.subr.mxu0 0.0
    %612 = vmatpush1.msra.mxu0 0.0
    %613 = vmatprep.subr.mxu0 0.0
    %614 = vmatpush1.msra.mxu0 0.0
    %615 = vmatprep.subr.mxu0 0.0
    %616 = vmatpush1.msra.mxu0 0.0
    %617 = vmatprep.subr.mxu0 0.0
    %618 = vmatpush1.msra.mxu0 0.0
    %619 = vmatprep.subr.mxu0 0.0
    %620 = vmatpush1.msra.mxu0 0.0
    %621 = vmatprep.mubr.f32.mxu0 0.0
    %622 = vmatmul.mubr.f32.gmra.mrb[0].mxu0 %v555
    %v623 = vpop.f32.mrb[0].mxu0
    %v624 = vadd.f32 %v307, %v623
    %v625 = vpop.f32.mrb[0].mxu0
    %626 = vdwg.mxu0
    %v627 = vxor.u32 %v624, 2147483648
    %v628 = vmul.f32 %v627, 1.442695
    %v629 = vpow.pop %v628
    %v630 = vadd.f32 %v629, 1.0
    %v631 = vrcp.pop %v630
    %v632 = vmul.f32 1.0, %v631
    %v633 = vtanh.pop %v624
    %v634 = vmul.f32 %v632, %v400
    %636 = vrot.lane.b32.xlu0 %v633, 64
    %v637 = vpop.permute.xlu0 %636
    %v639 = vmul.f32 %v632, %v637
    %641 = vrot.lane.b32.xlu0 %v639, 32
    %v642 = vpop.permute.xlu0 %641
    %v644 = vadd.f32 %v634, %v642
    %v645 = vtanh.pop %v644
    %647 = vrot.lane.b32.xlu0 %v645, 64
    %v648 = vpop.permute.xlu0 %647
    %v650 = vmul.f32 %v632, %v648
    %v651 = vrot.slane %v537, 1
    %v652 = vsel %vm297, %v538, %v651
    %653 = vrot.lane.b32.xlu0 %v652, 32
    %v654 = vpop.permute.xlu0 %653
    %v655 = vsel %vm166, %v654, 0
    %657 = vmatprep.subr.mxu0 0.0
    %658 = vmatpush1.msra.mxu0 %v58
    %659 = vmatprep.subr.mxu0 0.0
    %660 = vmatpush1.msra.mxu0 %v59
    %661 = vmatprep.subr.mxu0 0.0
    %662 = vmatpush1.msra.mxu0 %v60
    %663 = vmatprep.subr.mxu0 0.0
    %664 = vmatpush1.msra.mxu0 %v61
    %665 = vmatprep.subr.mxu0 0.0
    %666 = vmatpush1.msra.mxu0 0.0
    %667 = vmatprep.subr.mxu0 0.0
    %668 = vmatpush1.msra.mxu0 0.0
    %669 = vmatprep.subr.mxu0 0.0
    %670 = vmatpush1.msra.mxu0 0.0
    %671 = vmatprep.subr.mxu0 0.0
    %672 = vmatpush1.msra.mxu0 0.0
    %673 = vmatprep.subr.mxu0 0.0
    %674 = vmatpush1.msra.mxu0 0.0
    %675 = vmatprep.subr.mxu0 0.0
    %676 = vmatpush1.msra.mxu0 0.0
    %677 = vmatprep.subr.mxu0 0.0
    %678 = vmatpush1.msra.mxu0 0.0
    %679 = vmatprep.subr.mxu0 0.0
    %680 = vmatpush1.msra.mxu0 0.0
    %681 = vmatprep.subr.mxu0 0.0
    %682 = vmatpush1.msra.mxu0 0.0
    %683 = vmatprep.subr.mxu0 0.0
    %684 = vmatpush1.msra.mxu0 0.0
    %685 = vmatprep.subr.mxu0 0.0
    %686 = vmatpush1.msra.mxu0 0.0
    %687 = vmatprep.subr.mxu0 0.0
    %688 = vmatpush1.msra.mxu0 0.0
    %689 = vmatprep.subr.mxu0 0.0
    %690 = vmatpush1.msra.mxu0 0.0
    %691 = vmatprep.subr.mxu0 0.0
    %692 = vmatpush1.msra.mxu0 0.0
    %693 = vmatprep.subr.mxu0 0.0
    %694 = vmatpush1.msra.mxu0 0.0
    %695 = vmatprep.subr.mxu0 0.0
    %696 = vmatpush1.msra.mxu0 0.0
    %697 = vmatprep.subr.mxu0 0.0
    %698 = vmatpush1.msra.mxu0 0.0
    %699 = vmatprep.subr.mxu0 0.0
    %700 = vmatpush1.msra.mxu0 0.0
    %701 = vmatprep.subr.mxu0 0.0
    %702 = vmatpush1.msra.mxu0 0.0
    %703 = vmatprep.subr.mxu0 0.0
    %704 = vmatpush1.msra.mxu0 0.0
    %705 = vmatprep.subr.mxu0 0.0
    %706 = vmatpush1.msra.mxu0 0.0
    %707 = vmatprep.subr.mxu0 0.0
    %708 = vmatpush1.msra.mxu0 0.0
    %709 = vmatprep.subr.mxu0 0.0
    %710 = vmatpush1.msra.mxu0 0.0
    %711 = vmatprep.subr.mxu0 0.0
    %712 = vmatpush1.msra.mxu0 0.0
    %713 = vmatprep.subr.mxu0 0.0
    %714 = vmatpush1.msra.mxu0 0.0
    %715 = vmatprep.subr.mxu0 0.0
    %716 = vmatpush1.msra.mxu0 0.0
    %717 = vmatprep.subr.mxu0 0.0
    %718 = vmatpush1.msra.mxu0 0.0
    %719 = vmatprep.subr.mxu0 0.0
    %720 = vmatpush1.msra.mxu0 0.0
    %721 = vmatprep.mubr.f32.mxu0 0.0
    %722 = vmatmul.mubr.f32.gmra.mrb[0].mxu0 %v655
    %v723 = vpop.f32.mrb[0].mxu0
    %v724 = vadd.f32 0.0, %v723
    %v725 = vpop.f32.mrb[0].mxu0
    %726 = vdwg.mxu0
    %v728 = vrot.slane %v724, 6
    %v729 = vrot.slane %v724, 7
    %v732 = vadd.f32 %v158, %v728
    %v733 = vadd.f32 %v163, %v729
    %v734 = vxor.u32 %v732, 2147483648
    %v735 = vxor.u32 %v733, 2147483648
    %v736 = vmul.f32 %v734, 1.442695
    %v737 = vpow.pop %v736
    %v738 = vmul.f32 %v735, 1.442695
    %v739 = vpow.pop %v738
    %v740 = vadd.f32 %v737, 1.0
    %v741 = vadd.f32 %v739, 1.0
    %v742 = vrcp.pop %v740
    %v743 = vmul.f32 1.0, %v742
    %v744 = vrcp.pop %v741
    %v745 = vmul.f32 1.0, %v744
    %v746 = vtanh.pop %v732
    %v747 = vtanh.pop %v733
    %v750 = vrot.slane %v525, 7
    %v751 = vrot.slane %v526, 7
    %v754 = vmul.f32 %v743, %v750
    %v755 = vmul.f32 %v745, %v751
    %758 = vrot.lane.b32.xlu0 %v746, 64
    %v759 = vpop.permute.xlu0 %758
    %760 = vrot.lane.b32.xlu0 %v747, 64
    %v761 = vpop.permute.xlu0 %760
    %v764 = vmul.f32 %v743, %v759
    %v765 = vmul.f32 %v745, %v761
    %768 = vrot.lane.b32.xlu0 %v764, 32
    %v769 = vpop.permute.xlu0 %768
    %770 = vrot.lane.b32.xlu0 %v765, 32
    %v771 = vpop.permute.xlu0 %770
    %v774 = vadd.f32 %v754, %v769
    %v775 = vadd.f32 %v755, %v771
    %v776 = vtanh.pop %v774
    %v777 = vtanh.pop %v775
    %780 = vrot.lane.b32.xlu0 %v776, 64
    %v781 = vpop.permute.xlu0 %780
    %782 = vrot.lane.b32.xlu0 %v777, 64
    %v783 = vpop.permute.xlu0 %782
    %v786 = vmul.f32 %v743, %v781
    %v787 = vmul.f32 %v745, %v783
    %v790 = vrot.slane %v787, 7
    %vm791 = vcmask 1043459
    %v792 = vsel %vm791, %v790, %v786
    %793 = vrot.lane.b32.xlu0 %v792, 32
    %v794 = vpop.permute.xlu0 %793
    %v797 = vrot.slane %v650, 6
    %798 = vrot.lane.b32.xlu0 %v797, 64
    %v799 = vpop.permute.xlu0 %798
    %v801 = vsel %vm166, %v794, %v799
    %v803 = vrot.slane %v801, 2
    %v804 = vsel %vm309, %v803, 0
    %806 = vmatprep.subr.mxu0 0.0
    %807 = vmatpush1.msra.mxu0 %v63
    %808 = vmatprep.subr.mxu0 0.0
    %809 = vmatpush1.msra.mxu0 %v64
    %810 = vmatprep.subr.mxu0 0.0
    %811 = vmatpush1.msra.mxu0 %v65
    %812 = vmatprep.subr.mxu0 0.0
    %813 = vmatpush1.msra.mxu0 %v66
    %814 = vmatprep.subr.mxu0 0.0
    %815 = vmatpush1.msra.mxu0 %v67
    %816 = vmatprep.subr.mxu0 0.0
    %817 = vmatpush1.msra.mxu0 %v68
    %818 = vmatprep.subr.mxu0 0.0
    %819 = vmatpush1.msra.mxu0 %v69
    %820 = vmatprep.subr.mxu0 0.0
    %821 = vmatpush1.msra.mxu0 %v70
    %822 = vmatprep.subr.mxu0 0.0
    %823 = vmatpush1.msra.mxu0 0.0
    %824 = vmatprep.subr.mxu0 0.0
    %825 = vmatpush1.msra.mxu0 0.0
    %826 = vmatprep.subr.mxu0 0.0
    %827 = vmatpush1.msra.mxu0 0.0
    %828 = vmatprep.subr.mxu0 0.0
    %829 = vmatpush1.msra.mxu0 0.0
    %830 = vmatprep.subr.mxu0 0.0
    %831 = vmatpush1.msra.mxu0 0.0
    %832 = vmatprep.subr.mxu0 0.0
    %833 = vmatpush1.msra.mxu0 0.0
    %834 = vmatprep.subr.mxu0 0.0
    %835 = vmatpush1.msra.mxu0 0.0
    %836 = vmatprep.subr.mxu0 0.0
    %837 = vmatpush1.msra.mxu0 0.0
    %838 = vmatprep.subr.mxu0 0.0
    %839 = vmatpush1.msra.mxu0 0.0
    %840 = vmatprep.subr.mxu0 0.0
    %841 = vmatpush1.msra.mxu0 0.0
    %842 = vmatprep.subr.mxu0 0.0
    %843 = vmatpush1.msra.mxu0 0.0
    %844 = vmatprep.subr.mxu0 0.0
    %845 = vmatpush1.msra.mxu0 0.0
    %846 = vmatprep.subr.mxu0 0.0
    %847 = vmatpush1.msra.mxu0 0.0
    %848 = vmatprep.subr.mxu0 0.0
    %849 = vmatpush1.msra.mxu0 0.0
    %850 = vmatprep.subr.mxu0 0.0
    %851 = vmatpush1.msra.mxu0 0.0
    %852 = vmatprep.subr.mxu0 0.0
    %853 = vmatpush1.msra.mxu0 0.0
    %854 = vmatprep.subr.mxu0 0.0
    %855 = vmatpush1.msra.mxu0 0.0
    %856 = vmatprep.subr.mxu0 0.0
    %857 = vmatpush1.msra.mxu0 0.0
    %858 = vmatprep.subr.mxu0 0.0
    %859 = vmatpush1.msra.mxu0 0.0
    %860 = vmatprep.subr.mxu0 0.0
    %861 = vmatpush1.msra.mxu0 0.0
    %862 = vmatprep.subr.mxu0 0.0
    %863 = vmatpush1.msra.mxu0 0.0
    %864 = vmatprep.subr.mxu0 0.0
    %865 = vmatpush1.msra.mxu0 0.0
    %866 = vmatprep.subr.mxu0 0.0
    %867 = vmatpush1.msra.mxu0 0.0
    %868 = vmatprep.subr.mxu0 0.0
    %869 = vmatpush1.msra.mxu0 0.0
    %870 = vmatprep.mubr.f32.mxu0 0.0
    %871 = vmatmul.mubr.f32.gmra.mrb[0].mxu0 %v804
    %v872 = vpop.f32.mrb[0].mxu0
    %v873 = vadd.f32 %v307, %v872
    %v874 = vpop.f32.mrb[0].mxu0
    %875 = vdwg.mxu0
    %v876 = vxor.u32 %v873, 2147483648
    %v877 = vmul.f32 %v876, 1.442695
    %v878 = vpow.pop %v877
    %v879 = vadd.f32 %v878, 1.0
    %v880 = vrcp.pop %v879
    %v881 = vmul.f32 1.0, %v880
    %v882 = vtanh.pop %v873
    %v883 = vmul.f32 %v881, %v644
    %885 = vrot.lane.b32.xlu0 %v882, 64
    %v886 = vpop.permute.xlu0 %885
    %v888 = vmul.f32 %v881, %v886
    %890 = vrot.lane.b32.xlu0 %v888, 32
    %v891 = vpop.permute.xlu0 %890
    %v893 = vadd.f32 %v883, %v891
    %v894 = vtanh.pop %v893
    %896 = vrot.lane.b32.xlu0 %v894, 64
    %v897 = vpop.permute.xlu0 %896
    %v899 = vmul.f32 %v881, %v897
    %v900 = vrot.slane %v786, 2
    %v901 = vrot.slane %v787, 1
    %v902 = vsel %vm297, %v901, %v900
    %903 = vrot.lane.b32.xlu0 %v902, 32
    %v904 = vpop.permute.xlu0 %903
    %v905 = vsel %vm166, %v904, 0
    %907 = vmatprep.subr.mxu0 0.0
    %908 = vmatpush1.msra.mxu0 %v58
    %909 = vmatprep.subr.mxu0 0.0
    %910 = vmatpush1.msra.mxu0 %v59
    %911 = vmatprep.subr.mxu0 0.0
    %912 = vmatpush1.msra.mxu0 %v60
    %913 = vmatprep.subr.mxu0 0.0
    %914 = vmatpush1.msra.mxu0 %v61
    %915 = vmatprep.subr.mxu0 0.0
    %916 = vmatpush1.msra.mxu0 0.0
    %917 = vmatprep.subr.mxu0 0.0
    %918 = vmatpush1.msra.mxu0 0.0
    %919 = vmatprep.subr.mxu0 0.0
    %920 = vmatpush1.msra.mxu0 0.0
    %921 = vmatprep.subr.mxu0 0.0
    %922 = vmatpush1.msra.mxu0 0.0
    %923 = vmatprep.subr.mxu0 0.0
    %924 = vmatpush1.msra.mxu0 0.0
    %925 = vmatprep.subr.mxu0 0.0
    %926 = vmatpush1.msra.mxu0 0.0
    %927 = vmatprep.subr.mxu0 0.0
    %928 = vmatpush1.msra.mxu0 0.0
    %929 = vmatprep.subr.mxu0 0.0
    %930 = vmatpush1.msra.mxu0 0.0
    %931 = vmatprep.subr.mxu0 0.0
    %932 = vmatpush1.msra.mxu0 0.0
    %933 = vmatprep.subr.mxu0 0.0
    %934 = vmatpush1.msra.mxu0 0.0
    %935 = vmatprep.subr.mxu0 0.0
    %936 = vmatpush1.msra.mxu0 0.0
    %937 = vmatprep.subr.mxu0 0.0
    %938 = vmatpush1.msra.mxu0 0.0
    %939 = vmatprep.subr.mxu0 0.0
    %940 = vmatpush1.msra.mxu0 0.0
    %941 = vmatprep.subr.mxu0 0.0
    %942 = vmatpush1.msra.mxu0 0.0
    %943 = vmatprep.subr.mxu0 0.0
    %944 = vmatpush1.msra.mxu0 0.0
    %945 = vmatprep.subr.mxu0 0.0
    %946 = vmatpush1.msra.mxu0 0.0
    %947 = vmatprep.subr.mxu0 0.0
    %948 = vmatpush1.msra.mxu0 0.0
    %949 = vmatprep.subr.mxu0 0.0
    %950 = vmatpush1.msra.mxu0 0.0
    %951 = vmatprep.subr.mxu0 0.0
    %952 = vmatpush1.msra.mxu0 0.0
    %953 = vmatprep.subr.mxu0 0.0
    %954 = vmatpush1.msra.mxu0 0.0
    %955 = vmatprep.subr.mxu0 0.0
    %956 = vmatpush1.msra.mxu0 0.0
    %957 = vmatprep.subr.mxu0 0.0
    %958 = vmatpush1.msra.mxu0 0.0
    %959 = vmatprep.subr.mxu0 0.0
    %960 = vmatpush1.msra.mxu0 0.0
    %961 = vmatprep.subr.mxu0 0.0
    %962 = vmatpush1.msra.mxu0 0.0
    %963 = vmatprep.subr.mxu0 0.0
    %964 = vmatpush1.msra.mxu0 0.0
    %965 = vmatprep.subr.mxu0 0.0
    %966 = vmatpush1.msra.mxu0 0.0
    %967 = vmatprep.subr.mxu0 0.0
    %968 = vmatpush1.msra.mxu0 0.0
    %969 = vmatprep.subr.mxu0 0.0
    %970 = vmatpush1.msra.mxu0 0.0
    %971 = vmatprep.mubr.f32.mxu0 0.0
    %972 = vmatmul.mubr.f32.gmra.mrb[0].mxu0 %v905
    %v973 = vpop.f32.mrb[0].mxu0
    %v974 = vadd.f32 0.0, %v973
    %v975 = vpop.f32.mrb[0].mxu0
    %976 = vdwg.mxu0
    %v978 = vrot.slane %v974, 5
    %v979 = vrot.slane %v974, 6
    %v982 = vadd.f32 %v158, %v978
    %v983 = vadd.f32 %v163, %v979
    %v984 = vxor.u32 %v982, 2147483648
    %v985 = vxor.u32 %v983, 2147483648
    %v986 = vmul.f32 %v984, 1.442695
    %v987 = vpow.pop %v986
    %v988 = vmul.f32 %v985, 1.442695
    %v989 = vpow.pop %v988
    %v990 = vadd.f32 %v987, 1.0
    %v991 = vadd.f32 %v989, 1.0
    %v992 = vrcp.pop %v990
    %v993 = vmul.f32 1.0, %v992
    %v994 = vrcp.pop %v991
    %v995 = vmul.f32 1.0, %v994
    %v996 = vtanh.pop %v982
    %v997 = vtanh.pop %v983
    %v1000 = vrot.slane %v774, 7
    %v1001 = vrot.slane %v775, 7
    %v1004 = vmul.f32 %v993, %v1000
    %v1005 = vmul.f32 %v995, %v1001
    %1008 = vrot.lane.b32.xlu0 %v996, 64
    %v1009 = vpop.permute.xlu0 %1008
    %1010 = vrot.lane.b32.xlu0 %v997, 64
    %v1011 = vpop.permute.xlu0 %1010
    %v1014 = vmul.f32 %v993, %v1009
    %v1015 = vmul.f32 %v995, %v1011
    %1018 = vrot.lane.b32.xlu0 %v1014, 32
    %v1019 = vpop.permute.xlu0 %1018
    %1020 = vrot.lane.b32.xlu0 %v1015, 32
    %v1021 = vpop.permute.xlu0 %1020
    %v1024 = vadd.f32 %v1004, %v1019
    %v1025 = vadd.f32 %v1005, %v1021
    %v1026 = vtanh.pop %v1024
    %v1027 = vtanh.pop %v1025
    %1030 = vrot.lane.b32.xlu0 %v1026, 64
    %v1031 = vpop.permute.xlu0 %1030
    %1032 = vrot.lane.b32.xlu0 %v1027, 64
    %v1033 = vpop.permute.xlu0 %1032
    %v1036 = vmul.f32 %v993, %v1031
    %v1037 = vmul.f32 %v995, %v1033
    %v1040 = vrot.slane %v1037, 7
    %vm1041 = vcmask 1044484
    %v1042 = vsel %vm1041, %v1040, %v1036
    %1043 = vrot.lane.b32.xlu0 %v1042, 32
    %v1044 = vpop.permute.xlu0 %1043
    %v1047 = vrot.slane %v899, 5
    %1048 = vrot.lane.b32.xlu0 %v1047, 64
    %v1049 = vpop.permute.xlu0 %1048
    %v1051 = vsel %vm166, %v1044, %v1049
    %v1053 = vrot.slane %v1051, 3
    %v1054 = vsel %vm309, %v1053, 0
    %1056 = vmatprep.subr.mxu0 0.0
    %1057 = vmatpush1.msra.mxu0 %v63
    %1058 = vmatprep.subr.mxu0 0.0
    %1059 = vmatpush1.msra.mxu0 %v64
    %1060 = vmatprep.subr.mxu0 0.0
    %1061 = vmatpush1.msra.mxu0 %v65
    %1062 = vmatprep.subr.mxu0 0.0
    %1063 = vmatpush1.msra.mxu0 %v66
    %1064 = vmatprep.subr.mxu0 0.0
    %1065 = vmatpush1.msra.mxu0 %v67
    %1066 = vmatprep.subr.mxu0 0.0
    %1067 = vmatpush1.msra.mxu0 %v68
    %1068 = vmatprep.subr.mxu0 0.0
    %1069 = vmatpush1.msra.mxu0 %v69
    %1070 = vmatprep.subr.mxu0 0.0
    %1071 = vmatpush1.msra.mxu0 %v70
    %1072 = vmatprep.subr.mxu0 0.0
    %1073 = vmatpush1.msra.mxu0 0.0
    %1074 = vmatprep.subr.mxu0 0.0
    %1075 = vmatpush1.msra.mxu0 0.0
    %1076 = vmatprep.subr.mxu0 0.0
    %1077 = vmatpush1.msra.mxu0 0.0
    %1078 = vmatprep.subr.mxu0 0.0
    %1079 = vmatpush1.msra.mxu0 0.0
    %1080 = vmatprep.subr.mxu0 0.0
    %1081 = vmatpush1.msra.mxu0 0.0
    %1082 = vmatprep.subr.mxu0 0.0
    %1083 = vmatpush1.msra.mxu0 0.0
    %1084 = vmatprep.subr.mxu0 0.0
    %1085 = vmatpush1.msra.mxu0 0.0
    %1086 = vmatprep.subr.mxu0 0.0
    %1087 = vmatpush1.msra.mxu0 0.0
    %1088 = vmatprep.subr.mxu0 0.0
    %1089 = vmatpush1.msra.mxu0 0.0
    %1090 = vmatprep.subr.mxu0 0.0
    %1091 = vmatpush1.msra.mxu0 0.0
    %1092 = vmatprep.subr.mxu0 0.0
    %1093 = vmatpush1.msra.mxu0 0.0
    %1094 = vmatprep.subr.mxu0 0.0
    %1095 = vmatpush1.msra.mxu0 0.0
    %1096 = vmatprep.subr.mxu0 0.0
    %1097 = vmatpush1.msra.mxu0 0.0
    %1098 = vmatprep.subr.mxu0 0.0
    %1099 = vmatpush1.msra.mxu0 0.0
    %1100 = vmatprep.subr.mxu0 0.0
    %1101 = vmatpush1.msra.mxu0 0.0
    %1102 = vmatprep.subr.mxu0 0.0
    %1103 = vmatpush1.msra.mxu0 0.0
    %1104 = vmatprep.subr.mxu0 0.0
    %1105 = vmatpush1.msra.mxu0 0.0
    %1106 = vmatprep.subr.mxu0 0.0
    %1107 = vmatpush1.msra.mxu0 0.0
    %1108 = vmatprep.subr.mxu0 0.0
    %1109 = vmatpush1.msra.mxu0 0.0
    %1110 = vmatprep.subr.mxu0 0.0
    %1111 = vmatpush1.msra.mxu0 0.0
    %1112 = vmatprep.subr.mxu0 0.0
    %1113 = vmatpush1.msra.mxu0 0.0
    %1114 = vmatprep.subr.mxu0 0.0
    %1115 = vmatpush1.msra.mxu0 0.0
    %1116 = vmatprep.subr.mxu0 0.0
    %1117 = vmatpush1.msra.mxu0 0.0
    %1118 = vmatprep.subr.mxu0 0.0
    %1119 = vmatpush1.msra.mxu0 0.0
    %1120 = vmatprep.mubr.f32.mxu0 0.0
    %1121 = vmatmul.mubr.f32.gmra.mrb[0].mxu0 %v1054
    %v1122 = vpop.f32.mrb[0].mxu0
    %v1123 = vadd.f32 %v307, %v1122
    %v1124 = vpop.f32.mrb[0].mxu0
    %1125 = vdwg.mxu0
    %v1126 = vxor.u32 %v1123, 2147483648
    %v1127 = vmul.f32 %v1126, 1.442695
    %v1128 = vpow.pop %v1127
    %v1129 = vadd.f32 %v1128, 1.0
    %v1130 = vrcp.pop %v1129
    %v1131 = vmul.f32 1.0, %v1130
    %v1132 = vtanh.pop %v1123
    %v1133 = vmul.f32 %v1131, %v893
    %1135 = vrot.lane.b32.xlu0 %v1132, 64
    %v1136 = vpop.permute.xlu0 %1135
    %v1138 = vmul.f32 %v1131, %v1136
    %1140 = vrot.lane.b32.xlu0 %v1138, 32
    %v1141 = vpop.permute.xlu0 %1140
    %v1143 = vadd.f32 %v1133, %v1141
    %v1144 = vtanh.pop %v1143
    %1146 = vrot.lane.b32.xlu0 %v1144, 64
    %v1147 = vpop.permute.xlu0 %1146
    %v1149 = vmul.f32 %v1131, %v1147
    %v1150 = vrot.slane %v1036, 3
    %v1151 = vrot.slane %v1037, 2
    %v1152 = vsel %vm297, %v1151, %v1150
    %1153 = vrot.lane.b32.xlu0 %v1152, 32
    %v1154 = vpop.permute.xlu0 %1153
    %v1155 = vsel %vm166, %v1154, 0
    %1157 = vmatprep.subr.mxu0 0.0
    %1158 = vmatpush1.msra.mxu0 %v58
    %1159 = vmatprep.subr.mxu0 0.0
    %1160 = vmatpush1.msra.mxu0 %v59
    %1161 = vmatprep.subr.mxu0 0.0
    %1162 = vmatpush1.msra.mxu0 %v60
    %1163 = vmatprep.subr.mxu0 0.0
    %1164 = vmatpush1.msra.mxu0 %v61
    %1165 = vmatprep.subr.mxu0 0.0
    %1166 = vmatpush1.msra.mxu0 0.0
    %1167 = vmatprep.subr.mxu0 0.0
    %1168 = vmatpush1.msra.mxu0 0.0
    %1169 = vmatprep.subr.mxu0 0.0
    %1170 = vmatpush1.msra.mxu0 0.0
    %1171 = vmatprep.subr.mxu0 0.0
    %1172 = vmatpush1.msra.mxu0 0.0
    %1173 = vmatprep.subr.mxu0 0.0
    %1174 = vmatpush1.msra.mxu0 0.0
    %1175 = vmatprep.subr.mxu0 0.0
    %1176 = vmatpush1.msra.mxu0 0.0
    %1177 = vmatprep.subr.mxu0 0.0
    %1178 = vmatpush1.msra.mxu0 0.0
    %1179 = vmatprep.subr.mxu0 0.0
    %1180 = vmatpush1.msra.mxu0 0.0
    %1181 = vmatprep.subr.mxu0 0.0
    %1182 = vmatpush1.msra.mxu0 0.0
    %1183 = vmatprep.subr.mxu0 0.0
    %1184 = vmatpush1.msra.mxu0 0.0
    %1185 = vmatprep.subr.mxu0 0.0
    %1186 = vmatpush1.msra.mxu0 0.0
    %1187 = vmatprep.subr.mxu0 0.0
    %1188 = vmatpush1.msra.mxu0 0.0
    %1189 = vmatprep.subr.mxu0 0.0
    %1190 = vmatpush1.msra.mxu0 0.0
    %1191 = vmatprep.subr.mxu0 0.0
    %1192 = vmatpush1.msra.mxu0 0.0
    %1193 = vmatprep.subr.mxu0 0.0
    %1194 = vmatpush1.msra.mxu0 0.0
    %1195 = vmatprep.subr.mxu0 0.0
    %1196 = vmatpush1.msra.mxu0 0.0
    %1197 = vmatprep.subr.mxu0 0.0
    %1198 = vmatpush1.msra.mxu0 0.0
    %1199 = vmatprep.subr.mxu0 0.0
    %1200 = vmatpush1.msra.mxu0 0.0
    %1201 = vmatprep.subr.mxu0 0.0
    %1202 = vmatpush1.msra.mxu0 0.0
    %1203 = vmatprep.subr.mxu0 0.0
    %1204 = vmatpush1.msra.mxu0 0.0
    %1205 = vmatprep.subr.mxu0 0.0
    %1206 = vmatpush1.msra.mxu0 0.0
    %1207 = vmatprep.subr.mxu0 0.0
    %1208 = vmatpush1.msra.mxu0 0.0
    %1209 = vmatprep.subr.mxu0 0.0
    %1210 = vmatpush1.msra.mxu0 0.0
    %1211 = vmatprep.subr.mxu0 0.0
    %1212 = vmatpush1.msra.mxu0 0.0
    %1213 = vmatprep.subr.mxu0 0.0
    %1214 = vmatpush1.msra.mxu0 0.0
    %1215 = vmatprep.subr.mxu0 0.0
    %1216 = vmatpush1.msra.mxu0 0.0
    %1217 = vmatprep.subr.mxu0 0.0
    %1218 = vmatpush1.msra.mxu0 0.0
    %1219 = vmatprep.subr.mxu0 0.0
    %1220 = vmatpush1.msra.mxu0 0.0
    %1221 = vmatprep.mubr.f32.mxu0 0.0
    %1222 = vmatmul.mubr.f32.gmra.mrb[0].mxu0 %v1155
    %v1223 = vpop.f32.mrb[0].mxu0
    %v1224 = vadd.f32 0.0, %v1223
    %v1225 = vpop.f32.mrb[0].mxu0
    %1226 = vdwg.mxu0
    %v1228 = vrot.slane %v1224, 4
    %v1229 = vrot.slane %v1224, 5
    %v1232 = vadd.f32 %v158, %v1228
    %v1233 = vadd.f32 %v163, %v1229
    %v1234 = vxor.u32 %v1232, 2147483648
    %v1235 = vxor.u32 %v1233, 2147483648
    %v1236 = vmul.f32 %v1234, 1.442695
    %v1237 = vpow.pop %v1236
    %v1238 = vmul.f32 %v1235, 1.442695
    %v1239 = vpow.pop %v1238
    %v1240 = vadd.f32 %v1237, 1.0
    %v1241 = vadd.f32 %v1239, 1.0
    %v1242 = vrcp.pop %v1240
    %v1243 = vmul.f32 1.0, %v1242
    %v1244 = vrcp.pop %v1241
    %v1245 = vmul.f32 1.0, %v1244
    %v1246 = vtanh.pop %v1232
    %v1247 = vtanh.pop %v1233
    %v1250 = vrot.slane %v1024, 7
    %v1251 = vrot.slane %v1025, 7
    %v1254 = vmul.f32 %v1243, %v1250
    %v1255 = vmul.f32 %v1245, %v1251
    %1258 = vrot.lane.b32.xlu0 %v1246, 64
    %v1259 = vpop.permute.xlu0 %1258
    %1260 = vrot.lane.b32.xlu0 %v1247, 64
    %v1261 = vpop.permute.xlu0 %1260
    %v1264 = vmul.f32 %v1243, %v1259
    %v1265 = vmul.f32 %v1245, %v1261
    %1268 = vrot.lane.b32.xlu0 %v1264, 32
    %v1269 = vpop.permute.xlu0 %1268
    %1270 = vrot.lane.b32.xlu0 %v1265, 32
    %v1271 = vpop.permute.xlu0 %1270
    %v1274 = vadd.f32 %v1254, %v1269
    %v1275 = vadd.f32 %v1255, %v1271
    %v1276 = vtanh.pop %v1274
    %v1277 = vtanh.pop %v1275
    %1280 = vrot.lane.b32.xlu0 %v1276, 64
    %v1281 = vpop.permute.xlu0 %1280
    %1282 = vrot.lane.b32.xlu0 %v1277, 64
    %v1283 = vpop.permute.xlu0 %1282
    %v1286 = vmul.f32 %v1243, %v1281
    %v1287 = vmul.f32 %v1245, %v1283
    %v1290 = vrot.slane %v1287, 7
    %vm1291 = vcmask 1045509
    %v1292 = vsel %vm1291, %v1290, %v1286
    %1293 = vrot.lane.b32.xlu0 %v1292, 32
    %v1294 = vpop.permute.xlu0 %1293
    %v1297 = vrot.slane %v1149, 4
    %1298 = vrot.lane.b32.xlu0 %v1297, 64
    %v1299 = vpop.permute.xlu0 %1298
    %v1301 = vsel %vm166, %v1294, %v1299
    %v1303 = vrot.slane %v1301, 4
    %v1304 = vsel %vm309, %v1303, 0
    %1306 = vmatprep.subr.mxu0 0.0
    %1307 = vmatpush1.msra.mxu0 %v63
    %1308 = vmatprep.subr.mxu0 0.0
    %1309 = vmatpush1.msra.mxu0 %v64
    %1310 = vmatprep.subr.mxu0 0.0
    %1311 = vmatpush1.msra.mxu0 %v65
    %1312 = vmatprep.subr.mxu0 0.0
    %1313 = vmatpush1.msra.mxu0 %v66
    %1314 = vmatprep.subr.mxu0 0.0
    %1315 = vmatpush1.msra.mxu0 %v67
    %1316 = vmatprep.subr.mxu0 0.0
    %1317 = vmatpush1.msra.mxu0 %v68
    %1318 = vmatprep.subr.mxu0 0.0
    %1319 = vmatpush1.msra.mxu0 %v69
    %1320 = vmatprep.subr.mxu0 0.0
    %1321 = vmatpush1.msra.mxu0 %v70
    %1322 = vmatprep.subr.mxu0 0.0
    %1323 = vmatpush1.msra.mxu0 0.0
    %1324 = vmatprep.subr.mxu0 0.0
    %1325 = vmatpush1.msra.mxu0 0.0
    %1326 = vmatprep.subr.mxu0 0.0
    %1327 = vmatpush1.msra.mxu0 0.0
    %1328 = vmatprep.subr.mxu0 0.0
    %1329 = vmatpush1.msra.mxu0 0.0
    %1330 = vmatprep.subr.mxu0 0.0
    %1331 = vmatpush1.msra.mxu0 0.0
    %1332 = vmatprep.subr.mxu0 0.0
    %1333 = vmatpush1.msra.mxu0 0.0
    %1334 = vmatprep.subr.mxu0 0.0
    %1335 = vmatpush1.msra.mxu0 0.0
    %1336 = vmatprep.subr.mxu0 0.0
    %1337 = vmatpush1.msra.mxu0 0.0
    %1338 = vmatprep.subr.mxu0 0.0
    %1339 = vmatpush1.msra.mxu0 0.0
    %1340 = vmatprep.subr.mxu0 0.0
    %1341 = vmatpush1.msra.mxu0 0.0
    %1342 = vmatprep.subr.mxu0 0.0
    %1343 = vmatpush1.msra.mxu0 0.0
    %1344 = vmatprep.subr.mxu0 0.0
    %1345 = vmatpush1.msra.mxu0 0.0
    %1346 = vmatprep.subr.mxu0 0.0
    %1347 = vmatpush1.msra.mxu0 0.0
    %1348 = vmatprep.subr.mxu0 0.0
    %1349 = vmatpush1.msra.mxu0 0.0
    %1350 = vmatprep.subr.mxu0 0.0
    %1351 = vmatpush1.msra.mxu0 0.0
    %1352 = vmatprep.subr.mxu0 0.0
    %1353 = vmatpush1.msra.mxu0 0.0
    %1354 = vmatprep.subr.mxu0 0.0
    %1355 = vmatpush1.msra.mxu0 0.0
    %1356 = vmatprep.subr.mxu0 0.0
    %1357 = vmatpush1.msra.mxu0 0.0
    %1358 = vmatprep.subr.mxu0 0.0
    %1359 = vmatpush1.msra.mxu0 0.0
    %1360 = vmatprep.subr.mxu0 0.0
    %1361 = vmatpush1.msra.mxu0 0.0
    %1362 = vmatprep.subr.mxu0 0.0
    %1363 = vmatpush1.msra.mxu0 0.0
    %1364 = vmatprep.subr.mxu0 0.0
    %1365 = vmatpush1.msra.mxu0 0.0
    %1366 = vmatprep.subr.mxu0 0.0
    %1367 = vmatpush1.msra.mxu0 0.0
    %1368 = vmatprep.subr.mxu0 0.0
    %1369 = vmatpush1.msra.mxu0 0.0
    %1370 = vmatprep.mubr.f32.mxu0 0.0
    %1371 = vmatmul.mubr.f32.gmra.mrb[0].mxu0 %v1304
    %v1372 = vpop.f32.mrb[0].mxu0
    %v1373 = vadd.f32 %v307, %v1372
    %v1374 = vpop.f32.mrb[0].mxu0
    %1375 = vdwg.mxu0
    %v1376 = vxor.u32 %v1373, 2147483648
    %v1377 = vmul.f32 %v1376, 1.442695
    %v1378 = vpow.pop %v1377
    %v1379 = vadd.f32 %v1378, 1.0
    %v1380 = vrcp.pop %v1379
    %v1381 = vmul.f32 1.0, %v1380
    %v1382 = vtanh.pop %v1373
    %v1383 = vmul.f32 %v1381, %v1143
    %1385 = vrot.lane.b32.xlu0 %v1382, 64
    %v1386 = vpop.permute.xlu0 %1385
    %v1388 = vmul.f32 %v1381, %v1386
    %1390 = vrot.lane.b32.xlu0 %v1388, 32
    %v1391 = vpop.permute.xlu0 %1390
    %v1393 = vadd.f32 %v1383, %v1391
    %v1394 = vtanh.pop %v1393
    %1396 = vrot.lane.b32.xlu0 %v1394, 64
    %v1397 = vpop.permute.xlu0 %1396
    %v1399 = vmul.f32 %v1381, %v1397
    %v1400 = vrot.slane %v1286, 4
    %v1401 = vrot.slane %v1287, 3
    %v1402 = vsel %vm297, %v1401, %v1400
    %1403 = vrot.lane.b32.xlu0 %v1402, 32
    %v1404 = vpop.permute.xlu0 %1403
    %v1405 = vsel %vm166, %v1404, 0
    %1407 = vmatprep.subr.mxu0 0.0
    %1408 = vmatpush1.msra.mxu0 %v58
    %1409 = vmatprep.subr.mxu0 0.0
    %1410 = vmatpush1.msra.mxu0 %v59
    %1411 = vmatprep.subr.mxu0 0.0
    %1412 = vmatpush1.msra.mxu0 %v60
    %1413 = vmatprep.subr.mxu0 0.0
    %1414 = vmatpush1.msra.mxu0 %v61
    %1415 = vmatprep.subr.mxu0 0.0
    %1416 = vmatpush1.msra.mxu0 0.0
    %1417 = vmatprep.subr.mxu0 0.0
    %1418 = vmatpush1.msra.mxu0 0.0
    %1419 = vmatprep.subr.mxu0 0.0
    %1420 = vmatpush1.msra.mxu0 0.0
    %1421 = vmatprep.subr.mxu0 0.0
    %1422 = vmatpush1.msra.mxu0 0.0
    %1423 = vmatprep.subr.mxu0 0.0
    %1424 = vmatpush1.msra.mxu0 0.0
    %1425 = vmatprep.subr.mxu0 0.0
    %1426 = vmatpush1.msra.mxu0 0.0
    %1427 = vmatprep.subr.mxu0 0.0
    %1428 = vmatpush1.msra.mxu0 0.0
    %1429 = vmatprep.subr.mxu0 0.0
    %1430 = vmatpush1.msra.mxu0 0.0
    %1431 = vmatprep.subr.mxu0 0.0
    %1432 = vmatpush1.msra.mxu0 0.0
    %1433 = vmatprep.subr.mxu0 0.0
    %1434 = vmatpush1.msra.mxu0 0.0
    %1435 = vmatprep.subr.mxu0 0.0
    %1436 = vmatpush1.msra.mxu0 0.0
    %1437 = vmatprep.subr.mxu0 0.0
    %1438 = vmatpush1.msra.mxu0 0.0
    %1439 = vmatprep.subr.mxu0 0.0
    %1440 = vmatpush1.msra.mxu0 0.0
    %1441 = vmatprep.subr.mxu0 0.0
    %1442 = vmatpush1.msra.mxu0 0.0
    %1443 = vmatprep.subr.mxu0 0.0
    %1444 = vmatpush1.msra.mxu0 0.0
    %1445 = vmatprep.subr.mxu0 0.0
    %1446 = vmatpush1.msra.mxu0 0.0
    %1447 = vmatprep.subr.mxu0 0.0
    %1448 = vmatpush1.msra.mxu0 0.0
    %1449 = vmatprep.subr.mxu0 0.0
    %1450 = vmatpush1.msra.mxu0 0.0
    %1451 = vmatprep.subr.mxu0 0.0
    %1452 = vmatpush1.msra.mxu0 0.0
    %1453 = vmatprep.subr.mxu0 0.0
    %1454 = vmatpush1.msra.mxu0 0.0
    %1455 = vmatprep.subr.mxu0 0.0
    %1456 = vmatpush1.msra.mxu0 0.0
    %1457 = vmatprep.subr.mxu0 0.0
    %1458 = vmatpush1.msra.mxu0 0.0
    %1459 = vmatprep.subr.mxu0 0.0
    %1460 = vmatpush1.msra.mxu0 0.0
    %1461 = vmatprep.subr.mxu0 0.0
    %1462 = vmatpush1.msra.mxu0 0.0
    %1463 = vmatprep.subr.mxu0 0.0
    %1464 = vmatpush1.msra.mxu0 0.0
    %1465 = vmatprep.subr.mxu0 0.0
    %1466 = vmatpush1.msra.mxu0 0.0
    %1467 = vmatprep.subr.mxu0 0.0
    %1468 = vmatpush1.msra.mxu0 0.0
    %1469 = vmatprep.subr.mxu0 0.0
    %1470 = vmatpush1.msra.mxu0 0.0
    %1471 = vmatprep.mubr.f32.mxu0 0.0
    %1472 = vmatmul.mubr.f32.gmra.mrb[0].mxu0 %v1405
    %v1473 = vpop.f32.mrb[0].mxu0
    %v1474 = vadd.f32 0.0, %v1473
    %v1475 = vpop.f32.mrb[0].mxu0
    %1476 = vdwg.mxu0
    %v1478 = vrot.slane %v1474, 3
    %v1479 = vrot.slane %v1474, 4
    %v1482 = vadd.f32 %v158, %v1478
    %v1483 = vadd.f32 %v163, %v1479
    %v1484 = vxor.u32 %v1482, 2147483648
    %v1485 = vxor.u32 %v1483, 2147483648
    %v1486 = vmul.f32 %v1484, 1.442695
    %v1487 = vpow.pop %v1486
    %v1488 = vmul.f32 %v1485, 1.442695
    %v1489 = vpow.pop %v1488
    %v1490 = vadd.f32 %v1487, 1.0
    %v1491 = vadd.f32 %v1489, 1.0
    %v1492 = vrcp.pop %v1490
    %v1493 = vmul.f32 1.0, %v1492
    %v1494 = vrcp.pop %v1491
    %v1495 = vmul.f32 1.0, %v1494
    %v1496 = vtanh.pop %v1482
    %v1497 = vtanh.pop %v1483
    %v1500 = vrot.slane %v1274, 7
    %v1501 = vrot.slane %v1275, 7
    %v1504 = vmul.f32 %v1493, %v1500
    %v1505 = vmul.f32 %v1495, %v1501
    %1508 = vrot.lane.b32.xlu0 %v1496, 64
    %v1509 = vpop.permute.xlu0 %1508
    %1510 = vrot.lane.b32.xlu0 %v1497, 64
    %v1511 = vpop.permute.xlu0 %1510
    %v1514 = vmul.f32 %v1493, %v1509
    %v1515 = vmul.f32 %v1495, %v1511
    %1518 = vrot.lane.b32.xlu0 %v1514, 32
    %v1519 = vpop.permute.xlu0 %1518
    %1520 = vrot.lane.b32.xlu0 %v1515, 32
    %v1521 = vpop.permute.xlu0 %1520
    %v1524 = vadd.f32 %v1504, %v1519
    %v1525 = vadd.f32 %v1505, %v1521
    %v1526 = vtanh.pop %v1524
    %v1527 = vtanh.pop %v1525
    %1530 = vrot.lane.b32.xlu0 %v1526, 64
    %v1531 = vpop.permute.xlu0 %1530
    %1532 = vrot.lane.b32.xlu0 %v1527, 64
    %v1533 = vpop.permute.xlu0 %1532
    %v1536 = vmul.f32 %v1493, %v1531
    %v1537 = vmul.f32 %v1495, %v1533
    %v1540 = vrot.slane %v1537, 7
    %vm1541 = vcmask 1046534
    %v1542 = vsel %vm1541, %v1540, %v1536
    %1543 = vrot.lane.b32.xlu0 %v1542, 32
    %v1544 = vpop.permute.xlu0 %1543
    %v1547 = vrot.slane %v1399, 3
    %1548 = vrot.lane.b32.xlu0 %v1547, 64
    %v1549 = vpop.permute.xlu0 %1548
    %v1551 = vsel %vm166, %v1544, %v1549
    %v1553 = vrot.slane %v1551, 5
    %v1554 = vsel %vm309, %v1553, 0
    %1556 = vmatprep.subr.mxu0 0.0
    %1557 = vmatpush1.msra.mxu0 %v63
    %1558 = vmatprep.subr.mxu0 0.0
    %1559 = vmatpush1.msra.mxu0 %v64
    %1560 = vmatprep.subr.mxu0 0.0
    %1561 = vmatpush1.msra.mxu0 %v65
    %1562 = vmatprep.subr.mxu0 0.0
    %1563 = vmatpush1.msra.mxu0 %v66
    %1564 = vmatprep.subr.mxu0 0.0
    %1565 = vmatpush1.msra.mxu0 %v67
    %1566 = vmatprep.subr.mxu0 0.0
    %1567 = vmatpush1.msra.mxu0 %v68
    %1568 = vmatprep.subr.mxu0 0.0
    %1569 = vmatpush1.msra.mxu0 %v69
    %1570 = vmatprep.subr.mxu0 0.0
    %1571 = vmatpush1.msra.mxu0 %v70
    %1572 = vmatprep.subr.mxu0 0.0
    %1573 = vmatpush1.msra.mxu0 0.0
    %1574 = vmatprep.subr.mxu0 0.0
    %1575 = vmatpush1.msra.mxu0 0.0
    %1576 = vmatprep.subr.mxu0 0.0
    %1577 = vmatpush1.msra.mxu0 0.0
    %1578 = vmatprep.subr.mxu0 0.0
    %1579 = vmatpush1.msra.mxu0 0.0
    %1580 = vmatprep.subr.mxu0 0.0
    %1581 = vmatpush1.msra.mxu0 0.0
    %1582 = vmatprep.subr.mxu0 0.0
    %1583 = vmatpush1.msra.mxu0 0.0
    %1584 = vmatprep.subr.mxu0 0.0
    %1585 = vmatpush1.msra.mxu0 0.0
    %1586 = vmatprep.subr.mxu0 0.0
    %1587 = vmatpush1.msra.mxu0 0.0
    %1588 = vmatprep.subr.mxu0 0.0
    %1589 = vmatpush1.msra.mxu0 0.0
    %1590 = vmatprep.subr.mxu0 0.0
    %1591 = vmatpush1.msra.mxu0 0.0
    %1592 = vmatprep.subr.mxu0 0.0
    %1593 = vmatpush1.msra.mxu0 0.0
    %1594 = vmatprep.subr.mxu0 0.0
    %1595 = vmatpush1.msra.mxu0 0.0
    %1596 = vmatprep.subr.mxu0 0.0
    %1597 = vmatpush1.msra.mxu0 0.0
    %1598 = vmatprep.subr.mxu0 0.0
    %1599 = vmatpush1.msra.mxu0 0.0
    %1600 = vmatprep.subr.mxu0 0.0
    %1601 = vmatpush1.msra.mxu0 0.0
    %1602 = vmatprep.subr.mxu0 0.0
    %1603 = vmatpush1.msra.mxu0 0.0
    %1604 = vmatprep.subr.mxu0 0.0
    %1605 = vmatpush1.msra.mxu0 0.0
    %1606 = vmatprep.subr.mxu0 0.0
    %1607 = vmatpush1.msra.mxu0 0.0
    %1608 = vmatprep.subr.mxu0 0.0
    %1609 = vmatpush1.msra.mxu0 0.0
    %1610 = vmatprep.subr.mxu0 0.0
    %1611 = vmatpush1.msra.mxu0 0.0
    %1612 = vmatprep.subr.mxu0 0.0
    %1613 = vmatpush1.msra.mxu0 0.0
    %1614 = vmatprep.subr.mxu0 0.0
    %1615 = vmatpush1.msra.mxu0 0.0
    %1616 = vmatprep.subr.mxu0 0.0
    %1617 = vmatpush1.msra.mxu0 0.0
    %1618 = vmatprep.subr.mxu0 0.0
    %1619 = vmatpush1.msra.mxu0 0.0
    %1620 = vmatprep.mubr.f32.mxu0 0.0
    %1621 = vmatmul.mubr.f32.gmra.mrb[0].mxu0 %v1554
    %v1622 = vpop.f32.mrb[0].mxu0
    %v1623 = vadd.f32 %v307, %v1622
    %v1624 = vpop.f32.mrb[0].mxu0
    %1625 = vdwg.mxu0
    %v1626 = vxor.u32 %v1623, 2147483648
    %v1627 = vmul.f32 %v1626, 1.442695
    %v1628 = vpow.pop %v1627
    %v1629 = vadd.f32 %v1628, 1.0
    %v1630 = vrcp.pop %v1629
    %v1631 = vmul.f32 1.0, %v1630
    %v1632 = vtanh.pop %v1623
    %v1633 = vmul.f32 %v1631, %v1393
    %1635 = vrot.lane.b32.xlu0 %v1632, 64
    %v1636 = vpop.permute.xlu0 %1635
    %v1638 = vmul.f32 %v1631, %v1636
    %1640 = vrot.lane.b32.xlu0 %v1638, 32
    %v1641 = vpop.permute.xlu0 %1640
    %v1643 = vadd.f32 %v1633, %v1641
    %v1644 = vtanh.pop %v1643
    %1646 = vrot.lane.b32.xlu0 %v1644, 64
    %v1647 = vpop.permute.xlu0 %1646
    %v1649 = vmul.f32 %v1631, %v1647
    %v1650 = vrot.slane %v1536, 5
    %v1651 = vrot.slane %v1537, 4
    %v1652 = vsel %vm297, %v1651, %v1650
    %1653 = vrot.lane.b32.xlu0 %v1652, 32
    %v1654 = vpop.permute.xlu0 %1653
    %v1655 = vsel %vm166, %v1654, 0
    %1657 = vmatprep.subr.mxu0 0.0
    %1658 = vmatpush1.msra.mxu0 %v58
    %1659 = vmatprep.subr.mxu0 0.0
    %1660 = vmatpush1.msra.mxu0 %v59
    %1661 = vmatprep.subr.mxu0 0.0
    %1662 = vmatpush1.msra.mxu0 %v60
    %1663 = vmatprep.subr.mxu0 0.0
    %1664 = vmatpush1.msra.mxu0 %v61
    %1665 = vmatprep.subr.mxu0 0.0
    %1666 = vmatpush1.msra.mxu0 0.0
    %1667 = vmatprep.subr.mxu0 0.0
    %1668 = vmatpush1.msra.mxu0 0.0
    %1669 = vmatprep.subr.mxu0 0.0
    %1670 = vmatpush1.msra.mxu0 0.0
    %1671 = vmatprep.subr.mxu0 0.0
    %1672 = vmatpush1.msra.mxu0 0.0
    %1673 = vmatprep.subr.mxu0 0.0
    %1674 = vmatpush1.msra.mxu0 0.0
    %1675 = vmatprep.subr.mxu0 0.0
    %1676 = vmatpush1.msra.mxu0 0.0
    %1677 = vmatprep.subr.mxu0 0.0
    %1678 = vmatpush1.msra.mxu0 0.0
    %1679 = vmatprep.subr.mxu0 0.0
    %1680 = vmatpush1.msra.mxu0 0.0
    %1681 = vmatprep.subr.mxu0 0.0
    %1682 = vmatpush1.msra.mxu0 0.0
    %1683 = vmatprep.subr.mxu0 0.0
    %1684 = vmatpush1.msra.mxu0 0.0
    %1685 = vmatprep.subr.mxu0 0.0
    %1686 = vmatpush1.msra.mxu0 0.0
    %1687 = vmatprep.subr.mxu0 0.0
    %1688 = vmatpush1.msra.mxu0 0.0
    %1689 = vmatprep.subr.mxu0 0.0
    %1690 = vmatpush1.msra.mxu0 0.0
    %1691 = vmatprep.subr.mxu0 0.0
    %1692 = vmatpush1.msra.mxu0 0.0
    %1693 = vmatprep.subr.mxu0 0.0
    %1694 = vmatpush1.msra.mxu0 0.0
    %1695 = vmatprep.subr.mxu0 0.0
    %1696 = vmatpush1.msra.mxu0 0.0
    %1697 = vmatprep.subr.mxu0 0.0
    %1698 = vmatpush1.msra.mxu0 0.0
    %1699 = vmatprep.subr.mxu0 0.0
    %1700 = vmatpush1.msra.mxu0 0.0
    %1701 = vmatprep.subr.mxu0 0.0
    %1702 = vmatpush1.msra.mxu0 0.0
    %1703 = vmatprep.subr.mxu0 0.0
    %1704 = vmatpush1.msra.mxu0 0.0
    %1705 = vmatprep.subr.mxu0 0.0
    %1706 = vmatpush1.msra.mxu0 0.0
    %1707 = vmatprep.subr.mxu0 0.0
    %1708 = vmatpush1.msra.mxu0 0.0
    %1709 = vmatprep.subr.mxu0 0.0
    %1710 = vmatpush1.msra.mxu0 0.0
    %1711 = vmatprep.subr.mxu0 0.0
    %1712 = vmatpush1.msra.mxu0 0.0
    %1713 = vmatprep.subr.mxu0 0.0
    %1714 = vmatpush1.msra.mxu0 0.0
    %1715 = vmatprep.subr.mxu0 0.0
    %1716 = vmatpush1.msra.mxu0 0.0
    %1717 = vmatprep.subr.mxu0 0.0
    %1718 = vmatpush1.msra.mxu0 0.0
    %1719 = vmatprep.subr.mxu0 0.0
    %1720 = vmatpush1.msra.mxu0 0.0
    %1721 = vmatprep.mubr.f32.mxu0 0.0
    %1722 = vmatmul.mubr.f32.gmra.mrb[0].mxu0 %v1655
    %v1723 = vpop.f32.mrb[0].mxu0
    %v1724 = vadd.f32 0.0, %v1723
    %v1725 = vpop.f32.mrb[0].mxu0
    %1726 = vdwg.mxu0
    %v1728 = vrot.slane %v1724, 2
    %v1729 = vrot.slane %v1724, 3
    %v1732 = vadd.f32 %v158, %v1728
    %v1733 = vadd.f32 %v163, %v1729
    %v1734 = vxor.u32 %v1732, 2147483648
    %v1735 = vxor.u32 %v1733, 2147483648
    %v1736 = vmul.f32 %v1734, 1.442695
    %v1737 = vpow.pop %v1736
    %v1738 = vmul.f32 %v1735, 1.442695
    %v1739 = vpow.pop %v1738
    %v1740 = vadd.f32 %v1737, 1.0
    %v1741 = vadd.f32 %v1739, 1.0
    %v1742 = vrcp.pop %v1740
    %v1743 = vmul.f32 1.0, %v1742
    %v1744 = vrcp.pop %v1741
    %v1745 = vmul.f32 1.0, %v1744
    %v1746 = vtanh.pop %v1732
    %v1747 = vtanh.pop %v1733
    %v1750 = vrot.slane %v1524, 7
    %v1751 = vrot.slane %v1525, 7
    %v1754 = vmul.f32 %v1743, %v1750
    %v1755 = vmul.f32 %v1745, %v1751
    %1758 = vrot.lane.b32.xlu0 %v1746, 64
    %v1759 = vpop.permute.xlu0 %1758
    %1760 = vrot.lane.b32.xlu0 %v1747, 64
    %v1761 = vpop.permute.xlu0 %1760
    %v1764 = vmul.f32 %v1743, %v1759
    %v1765 = vmul.f32 %v1745, %v1761
    %1768 = vrot.lane.b32.xlu0 %v1764, 32
    %v1769 = vpop.permute.xlu0 %1768
    %1770 = vrot.lane.b32.xlu0 %v1765, 32
    %v1771 = vpop.permute.xlu0 %1770
    %v1774 = vadd.f32 %v1754, %v1769
    %v1775 = vadd.f32 %v1755, %v1771
    %v1776 = vtanh.pop %v1774
    %v1777 = vtanh.pop %v1775
    %1780 = vrot.lane.b32.xlu0 %v1776, 64
    %v1781 = vpop.permute.xlu0 %1780
    %1782 = vrot.lane.b32.xlu0 %v1777, 64
    %v1783 = vpop.permute.xlu0 %1782
    %v1786 = vmul.f32 %v1743, %v1781
    %v1787 = vmul.f32 %v1745, %v1783
    %v1790 = vrot.slane %v1787, 7
    %vm1791 = vcmask 1047559
    %v1792 = vsel %vm1791, %v1790, %v1786
    %1793 = vrot.lane.b32.xlu0 %v1792, 32
    %v1794 = vpop.permute.xlu0 %1793
    %v1797 = vrot.slane %v1649, 2
    %1798 = vrot.lane.b32.xlu0 %v1797, 64
    %v1799 = vpop.permute.xlu0 %1798
    %v1801 = vsel %vm166, %v1794, %v1799
    %v1803 = vrot.slane %v1801, 6
    %v1804 = vsel %vm309, %v1803, 0
    %1806 = vmatprep.subr.mxu0 0.0
    %1807 = vmatpush1.msra.mxu0 %v63
    %1808 = vmatprep.subr.mxu0 0.0
    %1809 = vmatpush1.msra.mxu0 %v64
    %1810 = vmatprep.subr.mxu0 0.0
    %1811 = vmatpush1.msra.mxu0 %v65
    %1812 = vmatprep.subr.mxu0 0.0
    %1813 = vmatpush1.msra.mxu0 %v66
    %1814 = vmatprep.subr.mxu0 0.0
    %1815 = vmatpush1.msra.mxu0 %v67
    %1816 = vmatprep.subr.mxu0 0.0
    %1817 = vmatpush1.msra.mxu0 %v68
    %1818 = vmatprep.subr.mxu0 0.0
    %1819 = vmatpush1.msra.mxu0 %v69
    %1820 = vmatprep.subr.mxu0 0.0
    %1821 = vmatpush1.msra.mxu0 %v70
    %1822 = vmatprep.subr.mxu0 0.0
    %1823 = vmatpush1.msra.mxu0 0.0
    %1824 = vmatprep.subr.mxu0 0.0
    %1825 = vmatpush1.msra.mxu0 0.0
    %1826 = vmatprep.subr.mxu0 0.0
    %1827 = vmatpush1.msra.mxu0 0.0
    %1828 = vmatprep.subr.mxu0 0.0
    %1829 = vmatpush1.msra.mxu0 0.0
    %1830 = vmatprep.subr.mxu0 0.0
    %1831 = vmatpush1.msra.mxu0 0.0
    %1832 = vmatprep.subr.mxu0 0.0
    %1833 = vmatpush1.msra.mxu0 0.0
    %1834 = vmatprep.subr.mxu0 0.0
    %1835 = vmatpush1.msra.mxu0 0.0
    %1836 = vmatprep.subr.mxu0 0.0
    %1837 = vmatpush1.msra.mxu0 0.0
    %1838 = vmatprep.subr.mxu0 0.0
    %1839 = vmatpush1.msra.mxu0 0.0
    %1840 = vmatprep.subr.mxu0 0.0
    %1841 = vmatpush1.msra.mxu0 0.0
    %1842 = vmatprep.subr.mxu0 0.0
    %1843 = vmatpush1.msra.mxu0 0.0
    %1844 = vmatprep.subr.mxu0 0.0
    %1845 = vmatpush1.msra.mxu0 0.0
    %1846 = vmatprep.subr.mxu0 0.0
    %1847 = vmatpush1.msra.mxu0 0.0
    %1848 = vmatprep.subr.mxu0 0.0
    %1849 = vmatpush1.msra.mxu0 0.0
    %1850 = vmatprep.subr.mxu0 0.0
    %1851 = vmatpush1.msra.mxu0 0.0
    %1852 = vmatprep.subr.mxu0 0.0
    %1853 = vmatpush1.msra.mxu0 0.0
    %1854 = vmatprep.subr.mxu0 0.0
    %1855 = vmatpush1.msra.mxu0 0.0
    %1856 = vmatprep.subr.mxu0 0.0
    %1857 = vmatpush1.msra.mxu0 0.0
    %1858 = vmatprep.subr.mxu0 0.0
    %1859 = vmatpush1.msra.mxu0 0.0
    %1860 = vmatprep.subr.mxu0 0.0
    %1861 = vmatpush1.msra.mxu0 0.0
    %1862 = vmatprep.subr.mxu0 0.0
    %1863 = vmatpush1.msra.mxu0 0.0
    %1864 = vmatprep.subr.mxu0 0.0
    %1865 = vmatpush1.msra.mxu0 0.0
    %1866 = vmatprep.subr.mxu0 0.0
    %1867 = vmatpush1.msra.mxu0 0.0
    %1868 = vmatprep.subr.mxu0 0.0
    %1869 = vmatpush1.msra.mxu0 0.0
    %1870 = vmatprep.mubr.f32.mxu0 0.0
    %1871 = vmatmul.mubr.f32.gmra.mrb[0].mxu0 %v1804
    %v1872 = vpop.f32.mrb[0].mxu0
    %v1873 = vadd.f32 %v307, %v1872
    %v1874 = vpop.f32.mrb[0].mxu0
    %1875 = vdwg.mxu0
    %v1876 = vxor.u32 %v1873, 2147483648
    %v1877 = vmul.f32 %v1876, 1.442695
    %v1878 = vpow.pop %v1877
    %v1879 = vadd.f32 %v1878, 1.0
    %v1880 = vrcp.pop %v1879
    %v1881 = vmul.f32 1.0, %v1880
    %v1882 = vtanh.pop %v1873
    %v1883 = vmul.f32 %v1881, %v1643
    %1885 = vrot.lane.b32.xlu0 %v1882, 64
    %v1886 = vpop.permute.xlu0 %1885
    %v1888 = vmul.f32 %v1881, %v1886
    %1890 = vrot.lane.b32.xlu0 %v1888, 32
    %v1891 = vpop.permute.xlu0 %1890
    %v1893 = vadd.f32 %v1883, %v1891
    %v1894 = vtanh.pop %v1893
    %1896 = vrot.lane.b32.xlu0 %v1894, 64
    %v1897 = vpop.permute.xlu0 %1896
    %v1899 = vmul.f32 %v1881, %v1897
    %v1900 = vrot.slane %v1786, 6
    %v1901 = vrot.slane %v1787, 5
    %v1902 = vsel %vm297, %v1901, %v1900
    %1903 = vrot.lane.b32.xlu0 %v1902, 32
    %v1904 = vpop.permute.xlu0 %1903
    %v1905 = vsel %vm166, %v1904, 0
    %1907 = vmatprep.subr.mxu0 0.0
    %1908 = vmatpush1.msra.mxu0 %v58
    %1909 = vmatprep.subr.mxu0 0.0
    %1910 = vmatpush1.msra.mxu0 %v59
    %1911 = vmatprep.subr.mxu0 0.0
    %1912 = vmatpush1.msra.mxu0 %v60
    %1913 = vmatprep.subr.mxu0 0.0
    %1914 = vmatpush1.msra.mxu0 %v61
    %1915 = vmatprep.subr.mxu0 0.0
    %1916 = vmatpush1.msra.mxu0 0.0
    %1917 = vmatprep.subr.mxu0 0.0
    %1918 = vmatpush1.msra.mxu0 0.0
    %1919 = vmatprep.subr.mxu0 0.0
    %1920 = vmatpush1.msra.mxu0 0.0
    %1921 = vmatprep.subr.mxu0 0.0
    %1922 = vmatpush1.msra.mxu0 0.0
    %1923 = vmatprep.subr.mxu0 0.0
    %1924 = vmatpush1.msra.mxu0 0.0
    %1925 = vmatprep.subr.mxu0 0.0
    %1926 = vmatpush1.msra.mxu0 0.0
    %1927 = vmatprep.subr.mxu0 0.0
    %1928 = vmatpush1.msra.mxu0 0.0
    %1929 = vmatprep.subr.mxu0 0.0
    %1930 = vmatpush1.msra.mxu0 0.0
    %1931 = vmatprep.subr.mxu0 0.0
    %1932 = vmatpush1.msra.mxu0 0.0
    %1933 = vmatprep.subr.mxu0 0.0
    %1934 = vmatpush1.msra.mxu0 0.0
    %1935 = vmatprep.subr.mxu0 0.0
    %1936 = vmatpush1.msra.mxu0 0.0
    %1937 = vmatprep.subr.mxu0 0.0
    %1938 = vmatpush1.msra.mxu0 0.0
    %1939 = vmatprep.subr.mxu0 0.0
    %1940 = vmatpush1.msra.mxu0 0.0
    %1941 = vmatprep.subr.mxu0 0.0
    %1942 = vmatpush1.msra.mxu0 0.0
    %1943 = vmatprep.subr.mxu0 0.0
    %1944 = vmatpush1.msra.mxu0 0.0
    %1945 = vmatprep.subr.mxu0 0.0
    %1946 = vmatpush1.msra.mxu0 0.0
    %1947 = vmatprep.subr.mxu0 0.0
    %1948 = vmatpush1.msra.mxu0 0.0
    %1949 = vmatprep.subr.mxu0 0.0
    %1950 = vmatpush1.msra.mxu0 0.0
    %1951 = vmatprep.subr.mxu0 0.0
    %1952 = vmatpush1.msra.mxu0 0.0
    %1953 = vmatprep.subr.mxu0 0.0
    %1954 = vmatpush1.msra.mxu0 0.0
    %1955 = vmatprep.subr.mxu0 0.0
    %1956 = vmatpush1.msra.mxu0 0.0
    %1957 = vmatprep.subr.mxu0 0.0
    %1958 = vmatpush1.msra.mxu0 0.0
    %1959 = vmatprep.subr.mxu0 0.0
    %1960 = vmatpush1.msra.mxu0 0.0
    %1961 = vmatprep.subr.mxu0 0.0
    %1962 = vmatpush1.msra.mxu0 0.0
    %1963 = vmatprep.subr.mxu0 0.0
    %1964 = vmatpush1.msra.mxu0 0.0
    %1965 = vmatprep.subr.mxu0 0.0
    %1966 = vmatpush1.msra.mxu0 0.0
    %1967 = vmatprep.subr.mxu0 0.0
    %1968 = vmatpush1.msra.mxu0 0.0
    %1969 = vmatprep.subr.mxu0 0.0
    %1970 = vmatpush1.msra.mxu0 0.0
    %1971 = vmatprep.mubr.f32.mxu0 0.0
    %1972 = vmatmul.mubr.f32.gmra.mrb[0].mxu0 %v1905
    %v1973 = vpop.f32.mrb[0].mxu0
    %v1974 = vadd.f32 0.0, %v1973
    %v1975 = vpop.f32.mrb[0].mxu0
    %1976 = vdwg.mxu0
    %v1978 = vrot.slane %v1974, 1
    %v1979 = vrot.slane %v1974, 2
    %v1982 = vadd.f32 %v158, %v1978
    %v1983 = vadd.f32 %v163, %v1979
    %v1984 = vxor.u32 %v1982, 2147483648
    %v1985 = vxor.u32 %v1983, 2147483648
    %v1986 = vmul.f32 %v1984, 1.442695
    %v1987 = vpow.pop %v1986
    %v1988 = vmul.f32 %v1985, 1.442695
    %v1989 = vpow.pop %v1988
    %v1990 = vadd.f32 %v1987, 1.0
    %v1991 = vadd.f32 %v1989, 1.0
    %v1992 = vrcp.pop %v1990
    %v1993 = vmul.f32 1.0, %v1992
    %v1994 = vrcp.pop %v1991
    %v1995 = vmul.f32 1.0, %v1994
    %v1996 = vtanh.pop %v1982
    %v1997 = vtanh.pop %v1983
    %v2000 = vrot.slane %v1774, 7
    %v2001 = vrot.slane %v1775, 7
    %v2004 = vmul.f32 %v1993, %v2000
    %v2005 = vmul.f32 %v1995, %v2001
    %2008 = vrot.lane.b32.xlu0 %v1996, 64
    %v2009 = vpop.permute.xlu0 %2008
    %2010 = vrot.lane.b32.xlu0 %v1997, 64
    %v2011 = vpop.permute.xlu0 %2010
    %v2014 = vmul.f32 %v1993, %v2009
    %v2015 = vmul.f32 %v1995, %v2011
    %2018 = vrot.lane.b32.xlu0 %v2014, 32
    %v2019 = vpop.permute.xlu0 %2018
    %2020 = vrot.lane.b32.xlu0 %v2015, 32
    %v2021 = vpop.permute.xlu0 %2020
    %v2024 = vadd.f32 %v2004, %v2019
    %v2025 = vadd.f32 %v2005, %v2021
    %v2026 = vtanh.pop %v2024
    %v2027 = vtanh.pop %v2025
    %2030 = vrot.lane.b32.xlu0 %v2026, 64
    %v2031 = vpop.permute.xlu0 %2030
    %2032 = vrot.lane.b32.xlu0 %v2027, 64
    %v2033 = vpop.permute.xlu0 %2032
    %v2036 = vmul.f32 %v1993, %v2031
    %v2037 = vmul.f32 %v1995, %v2033
    %v2040 = vrot.slane %v2037, 7
    %2041 = vrot.lane.b32.xlu0 %v2036, 32
    %v2042 = vpop.permute.xlu0 %2041
    %2043 = vrot.lane.b32.xlu0 %v2040, 32
    %v2044 = vpop.permute.xlu0 %2043
    %v2048 = vrot.slane %v1899, 1
    %2049 = vrot.lane.b32.xlu0 %v2048, 64
    %v2050 = vpop.permute.xlu0 %2049
    %v2052 = vsel %vm166, %v2042, %v2050
    %v2053 = vsel %vm166, %v2044, %v2050
    %vm2056 = vcmask 1040384
    %v2057 = vrot.slane %v2052, 7
    %v2058 = vrot.slane %v2053, 7
    %v2059 = vsel %vm2056, %v2057, %v2058
    %v2060 = vsel %vm309, %v2059, 0
    %2062 = vmatprep.subr.mxu0 0.0
    %2063 = vmatpush1.msra.mxu0 %v63
    %2064 = vmatprep.subr.mxu0 0.0
    %2065 = vmatpush1.msra.mxu0 %v64
    %2066 = vmatprep.subr.mxu0 0.0
    %2067 = vmatpush1.msra.mxu0 %v65
    %2068 = vmatprep.subr.mxu0 0.0
    %2069 = vmatpush1.msra.mxu0 %v66
    %2070 = vmatprep.subr.mxu0 0.0
    %2071 = vmatpush1.msra.mxu0 %v67
    %2072 = vmatprep.subr.mxu0 0.0
    %2073 = vmatpush1.msra.mxu0 %v68
    %2074 = vmatprep.subr.mxu0 0.0
    %2075 = vmatpush1.msra.mxu0 %v69
    %2076 = vmatprep.subr.mxu0 0.0
    %2077 = vmatpush1.msra.mxu0 %v70
    %2078 = vmatprep.subr.mxu0 0.0
    %2079 = vmatpush1.msra.mxu0 0.0
    %2080 = vmatprep.subr.mxu0 0.0
    %2081 = vmatpush1.msra.mxu0 0.0
    %2082 = vmatprep.subr.mxu0 0.0
    %2083 = vmatpush1.msra.mxu0 0.0
    %2084 = vmatprep.subr.mxu0 0.0
    %2085 = vmatpush1.msra.mxu0 0.0
    %2086 = vmatprep.subr.mxu0 0.0
    %2087 = vmatpush1.msra.mxu0 0.0
    %2088 = vmatprep.subr.mxu0 0.0
    %2089 = vmatpush1.msra.mxu0 0.0
    %2090 = vmatprep.subr.mxu0 0.0
    %2091 = vmatpush1.msra.mxu0 0.0
    %2092 = vmatprep.subr.mxu0 0.0
    %2093 = vmatpush1.msra.mxu0 0.0
    %2094 = vmatprep.subr.mxu0 0.0
    %2095 = vmatpush1.msra.mxu0 0.0
    %2096 = vmatprep.subr.mxu0 0.0
    %2097 = vmatpush1.msra.mxu0 0.0
    %2098 = vmatprep.subr.mxu0 0.0
    %2099 = vmatpush1.msra.mxu0 0.0
    %2100 = vmatprep.subr.mxu0 0.0
    %2101 = vmatpush1.msra.mxu0 0.0
    %2102 = vmatprep.subr.mxu0 0.0
    %2103 = vmatpush1.msra.mxu0 0.0
    %2104 = vmatprep.subr.mxu0 0.0
    %2105 = vmatpush1.msra.mxu0 0.0
    %2106 = vmatprep.subr.mxu0 0.0
    %2107 = vmatpush1.msra.mxu0 0.0
    %2108 = vmatprep.subr.mxu0 0.0
    %2109 = vmatpush1.msra.mxu0 0.0
    %2110 = vmatprep.subr.mxu0 0.0
    %2111 = vmatpush1.msra.mxu0 0.0
    %2112 = vmatprep.subr.mxu0 0.0
    %2113 = vmatpush1.msra.mxu0 0.0
    %2114 = vmatprep.subr.mxu0 0.0
    %2115 = vmatpush1.msra.mxu0 0.0
    %2116 = vmatprep.subr.mxu0 0.0
    %2117 = vmatpush1.msra.mxu0 0.0
    %2118 = vmatprep.subr.mxu0 0.0
    %2119 = vmatpush1.msra.mxu0 0.0
    %2120 = vmatprep.subr.mxu0 0.0
    %2121 = vmatpush1.msra.mxu0 0.0
    %2122 = vmatprep.subr.mxu0 0.0
    %2123 = vmatpush1.msra.mxu0 0.0
    %2124 = vmatprep.subr.mxu0 0.0
    %2125 = vmatpush1.msra.mxu0 0.0
    %2126 = vmatprep.mubr.f32.mxu0 0.0
    %2127 = vmatmul.mubr.f32.gmra.mrb[0].mxu0 %v2060
    %v2128 = vpop.f32.mrb[0].mxu0
    %v2129 = vadd.f32 %v307, %v2128
    %v2130 = vpop.f32.mrb[0].mxu0
    %2131 = vdwg.mxu0
    %v2132 = vxor.u32 %v2129, 2147483648
    %v2133 = vmul.f32 %v2132, 1.442695
    %v2134 = vpow.pop %v2133
    %v2135 = vadd.f32 %v2134, 1.0
    %v2136 = vrcp.pop %v2135
    %v2137 = vmul.f32 1.0, %v2136
    %v2138 = vtanh.pop %v2129
    %v2139 = vmul.f32 %v2137, %v1893
    %2141 = vrot.lane.b32.xlu0 %v2138, 64
    %v2142 = vpop.permute.xlu0 %2141
    %v2144 = vmul.f32 %v2137, %v2142
    %2146 = vrot.lane.b32.xlu0 %v2144, 32
    %v2147 = vpop.permute.xlu0 %2146
    %v2149 = vadd.f32 %v2139, %v2147
    %v2150 = vtanh.pop %v2149
    %2152 = vrot.lane.b32.xlu0 %v2150, 64
    %v2153 = vpop.permute.xlu0 %2152
    %v2155 = vmul.f32 %v2137, %v2153
    %v2156 = vld [vmem:[%s6] sm:$0x1]
    %v2158 = vlaneseq
    %v2159 = vshrl.u32 %v2158, 7
    %v2160 = vsub.s32 0, %v2159
    %v2161 = vrot.slane %v2156, %v2160
    %2162 = vrot.lane.b32.xlu0 %v2161, 96
    %v2163 = vpop.permute.xlu0 %2162
    %v2165 = vmul.f32 %v2155, %v2163
    %2167 = vrot.lane.b32.xlu0 %v2165, 32
    %v2168 = vpop.permute.xlu0 %2167
    %vm2170 = vcmask 254976
    %v2171 = vsel %vm2170, %v2168, 0.0
    %2172 = vadd.xlane.f32.xlu0 %v2171
    %v2173 = vpop.xlane.xlu0 %2172
    %v2174 = vld [vmem:[#allocation2] sm:$0x1]
    %v2176 = vlaneseq
    %v2177 = vshrl.u32 %v2176, 7
    %v2178 = vsub.s32 0, %v2177
    %v2179 = vrot.slane %v2174, %v2178
    %v2181 = vadd.f32 %v2173, %v2179
    %vm2182 = vcmask 1024
    %2183 = vst.msk [vmem:[%s8] sm:$0x3] %vm2182, %v2181
    // Predicated region
    $region42: #{tpu_custom_call.1} parent=1 // pred_check
      _
    $region43: #{tpu_custom_call.1} parent=1 // pred_check_branch
      %2185 = sbr.rel (0) target = $region45
    $region44: #{tpu_custom_call.1} parent=1 // pred_region
      _
    $region45: #{tpu_custom_call.1} parent=1 // pred_fallthru
      _
    // Predicated region
    $region46: #{tpu_custom_call.1} parent=1 // pred_check
      _
    $region47: #{tpu_custom_call.1} parent=1 // pred_check_branch
      %2187 = sbr.rel (0) target = $region49
    $region48: #{tpu_custom_call.1} parent=1 // pred_region
      _
    $region49: #{tpu_custom_call.1} parent=1 // pred_fallthru
      _
    %2188 = vsyncpa [#allocation4], 1
    %2189 = vsyncpa [#allocation6], 1

</llo_original>
